<compile_context>
chip_gen: v7x
topology: tpu7x:2x2x1
jax: 0.10.0
libtpu: 0.0.40
codegen_flags: <defaults>
</compile_context>

<pallas_src>
import functools

import numpy as np
import jax
import jax.numpy as jnp
from jax import lax
from jax.experimental import pallas as pl
from jax.experimental.pallas import tpu as pltpu


# ------------------------- configuration (small, fixed) -------------------------
CFG = dict(
    input_size=(4, 4),       # np.prod -> input_dim = 16
    lstm_hidden_dim=32,
    num_lstm_layers=2,
    fc_hidden_dim=32,
    num_fc_layers=2,
    fc_top_dim=4,
    dropout_p=0.1,           # TODO(synk): dropout omitted (inference-mode identity).
    seq_len=8,
    batch=4,
)

LANES = 128  # lane width; FC head and packed f32 slab are lane-dense at this width


# ----------------------------- Pallas kernel -------------------------------------
def make_lstm_mlp_kernel(T, B, D, H, L, F, Fh, Ftop):
    """Fused stacked-LSTM + MLP-head kernel.

    Ref order:
      x_ref  : (T*B, D)  f32      time-major flattened input
      wf_ref : (D + L + H + (F-1)*Fh + Fh + (F+1), LANES)  f32
                 rows [0:D]                  W_ih0^T              (cols 0:4H live)
                 rows [D:D+L]                b_ih+b_hh per layer  (cols 0:4H live)
                 rows [D+L : D+L+H]          FC0  W^T             (cols 0:Fh live)
                 per f in 1..F-1: Fh rows    FC_f W^T             (cols 0:Fh live)
                 Fh rows                     top  W^T             (cols 0:Ftop live)
                 F+1 rows                    FC biases            (padded)
      wr_ref : (H + (L-1)*2H, 4H) bf16
                 rows [0:H]                  W_hh0^T
                 per layer l>0: 2H rows      [W_ihl^T ; W_hhl^T]
      out_ref: (B, LANES) f32     lane-dense output slab
    """
    H4 = 4 * H

    def kernel(x_ref, wf_ref, wr_ref, out_ref):
        # ---- hoisted constants (computed once, kept in vregs) -------------------
        lane = lax.broadcasted_iota(jnp.int32, (B, H4), 1)
        is_g = jnp.logical_and(lane >= 2 * H, lane < 3 * H)
        # pre-scale g lanes by 2; post: act = sigmoid(x*pre)*pre + post
        #   i/f/o lanes -> sigmoid(x);  g lanes -> 2*sigmoid(2x) - 1 == tanh(x)
        pre = jnp.where(is_g, jnp.float32(2.0), jnp.float32(1.0))
        post = jnp.where(is_g, jnp.float32(-1.0), jnp.float32(0.0))

        lstm_b = wf_ref[D:D + L, 0:H4]                      # (L, 4H) f32

        # ---- hoisted layer-0 input projection for all timesteps -----------------
        x_all = x_ref[...]                                  # (T*B, D) f32
        w_ih0 = wf_ref[0:D, 0:H4]                           # (D, 4H)  f32
        b0 = jnp.broadcast_to(lstm_b[0:1, :], (T * B, H4))
        gates_in0 = (
            jnp.dot(x_all, w_ih0, preferred_element_type=jnp.float32) + b0
        )                                                   # (T*B, 4H)

        # ---- recurrent weights loaded once (already bf16) ------------------------
        w_hh0 = wr_ref[0:H, :]                              # (H, 4H) bf16
        w_cat = []
        b_bcast = []
        off = H
        for l in range(1, L):
            w_cat.append(wr_ref[off:off + 2 * H, :])        # (2H, 4H) bf16
            b_bcast.append(jnp.broadcast_to(lstm_b[l:l + 1, :], (B, H4)))
            off += 2 * H

        def lstm_cell(gates, c_prev):
            act = jax.nn.sigmoid(gates * pre) * pre + post
            i_g = act[:, 0:H]
            f_g = act[:, H:2 * H]
            g_g = act[:, 2 * H:3 * H]
            o_g = act[:, 3 * H:4 * H]
            c_new = f_g * c_prev + i_g * g_g
            h_new = o_g * jnp.tanh(c_new)
            return h_new, c_new

        # ---- recurrence: state stays in vregs, loop fully unrolled (T static) ----
        # Only the MXU operands are bf16; accumulation / elementwise stays f32.
        h = [jnp.zeros((B, H), jnp.float32) for _ in range(L)]
        c = [jnp.zeros((B, H), jnp.float32) for _ in range(L)]
        for t in range(T):
            gates0 = gates_in0[t * B:(t + 1) * B, :] + jnp.dot(
                h[0].astype(jnp.bfloat16), w_hh0,
                preferred_element_type=jnp.float32)
            h[0], c[0] = lstm_cell(gates0, c[0])
            for l in range(1, L):
                cat = jnp.concatenate([h[l - 1], h[l]], axis=1)        # (B, 2H)
                gates = jnp.dot(
                    cat.astype(jnp.bfloat16), w_cat[l - 1],
                    preferred_element_type=jnp.float32) + b_bcast[l - 1]
                h[l], c[l] = lstm_cell(gates, c[l])

        # ---- MLP head (de-padded K, lane-dense 128-wide output) ------------------
        # out = lstm_out[:, -1, :]  == last-step hidden of the top LSTM layer
        row = D + L
        fb_row = D + L + H + (F - 1) * Fh + Fh              # first FC-bias row
        act = h[L - 1]                                      # (B, H) f32

        w = wf_ref[row:row + H, :]                          # (H, LANES)
        act = jnp.maximum(
            jnp.dot(act, w, preferred_element_type=jnp.float32)
            + wf_ref[fb_row:fb_row + 1, :], 0.0)
        row += H
        for f in range(1, F):
            w = wf_ref[row:row + Fh, :]                     # (Fh, LANES)
            act = jnp.maximum(
                jnp.dot(act[:, 0:Fh], w, preferred_element_type=jnp.float32)
                + wf_ref[fb_row + f:fb_row + f + 1, :], 0.0)
            row += Fh
            # TODO(synk): nn.Dropout(p) after ReLU for f > 0 is identity in eval mode.

        w = wf_ref[row:row + Fh, :]                         # top layer, cols 0:Ftop live
        out = jnp.dot(act[:, 0:Fh], w, preferred_element_type=jnp.float32) \
            + wf_ref[fb_row + F:fb_row + F + 1, :]
        out_ref[...] = out.astype(out_ref.dtype)

    return kernel


# ------------------- one-time weight packing (OFF the per-call path) -------------
def pack_params(params, cfg):
    """Pack all weights/biases into two slabs. Called once at param-load time."""
    D = int(np.prod(cfg["input_size"]))
    H = cfg["lstm_hidden_dim"]
    L = cfg["num_lstm_layers"]
    F = cfg["num_fc_layers"]
    Fh = cfg["fc_hidden_dim"]
    Ftop = cfg["fc_top_dim"]
    H4 = 4 * H
    assert H4 <= LANES and Fh <= LANES and Ftop <= LANES

    n_rows = D + L + H + (F - 1) * Fh + Fh + (F + 1)
    wf = np.zeros((n_rows, LANES), np.float32)

    # LSTM layer 0: input projection + biases; recurrent weights go to bf16 slab.
    w_ih0, w_hh0, b_ih0, b_hh0 = (np.asarray(a) for a in params["lstm"][0])
    wf[0:D, 0:H4] = w_ih0.T
    wf[D, 0:H4] = b_ih0 + b_hh0
    rec_rows = [w_hh0.T]
    for l in range(1, L):
        w_ih, w_hh, b_ih, b_hh = (np.asarray(a) for a in params["lstm"][l])
        wf[D + l, 0:H4] = b_ih + b_hh
        rec_rows.append(np.concatenate([w_ih.T, w_hh.T], axis=0))      # (2H, 4H)
    wr = np.concatenate(rec_rows, axis=0).astype(np.float32)           # (H+(L-1)*2H, 4H)

    # FC head (contraction dim NOT padded; output dim padded to 128 lanes).
    row = D + L
    fb_row = D + L + H + (F - 1) * Fh + Fh
    w0, b0 = (np.asarray(a) for a in params["fc"][0])                  # (Fh, H), (Fh,)
    wf[row:row + H, 0:Fh] = w0.T
    wf[fb_row, 0:Fh] = b0
    row += H
    for f in range(1, F):
        w, b = (np.asarray(a) for a in params["fc"][f])                # (Fh, Fh), (Fh,)
        wf[row:row + Fh, 0:Fh] = w.T
        wf[fb_row + f, 0:Fh] = b
        row += Fh
    w_top, b_top = (np.asarray(a) for a in params["fc_top"])           # (Ftop, Fh), (Ftop,)
    wf[row:row + Fh, 0:Ftop] = w_top.T
    wf[fb_row + F, 0:Ftop] = b_top

    wf_dev = jax.device_put(jnp.asarray(wf))
    wr_dev = jax.device_put(jnp.asarray(wr).astype(jnp.bfloat16))
    return wf_dev, wr_dev


# ----------------------------- per-call forward (jitted) --------------------------
def ud_lstm_ia_gp_forward(x_ncl, wf, wr, cfg):
    """x_ncl: (batch, input_dim, seq) f32; wf/wr: pre-packed slabs.
    Returns (batch, fc_top_dim) f32."""
    B, D, T = x_ncl.shape
    H = cfg["lstm_hidden_dim"]
    L = cfg["num_lstm_layers"]
    F = cfg["num_fc_layers"]
    Fh = cfg["fc_hidden_dim"]
    Ftop = cfg["fc_top_dim"]
    H4 = 4 * H

    # pad batch to sublane width (8) and flatten time-major: (T*B_pad, D)
    B_pad = int(np.ceil(B / 8) * 8)
    x_tbd = jnp.transpose(x_ncl, (2, 0, 1)).astype(jnp.float32)        # (T, B, D)
    if B_pad != B:
        x_tbd = jnp.pad(x_tbd, ((0, 0), (0, B_pad - B), (0, 0)))
    x_flat = x_tbd.reshape(T * B_pad, D)

    kernel = make_lstm_mlp_kernel(T, B_pad, D, H, L, F, Fh, Ftop)

    flops = 2 * (T * B_pad * D * H4
                 + T * B_pad * H * H4
                 + T * (L - 1) * B_pad * 2 * H * H4
                 + B_pad * H * LANES
                 + (F - 1) * B_pad * Fh * LANES
                 + B_pad * Fh * LANES)
    transcendentals = T * L * B_pad * (H4 + H)
    bytes_accessed = (int(np.prod(x_flat.shape)) * 4
                      + int(np.prod(wf.shape)) * 4
                      + int(np.prod(wr.shape)) * 2
                      + B_pad * LANES * 4)

    vmem = pltpu.MemorySpace.VMEM
    out_pad = pl.pallas_call(
        kernel,
        out_shape=jax.ShapeDtypeStruct((B_pad, LANES), jnp.float32),
        in_specs=[pl.BlockSpec(memory_space=vmem)] * 3,
        out_specs=pl.BlockSpec(memory_space=vmem),
        cost_estimate=pl.CostEstimate(flops=flops,
                                      transcendentals=transcendentals,
                                      bytes_accessed=bytes_accessed),
    )(x_flat, wf, wr)
    return out_pad[:B, :Ftop]


# ----------------------------- parameter init ------------------------------------
def init_params(key, cfg):
    D = int(np.prod(cfg["input_size"]))
    H = cfg["lstm_hidden_dim"]
    L = cfg["num_lstm_layers"]
    F = cfg["num_fc_layers"]
    Fh = cfg["fc_hidden_dim"]
    Ftop = cfg["fc_top_dim"]

    params = {"lstm": [], "fc": []}
    for l in range(L):
        din = D if l == 0 else H
        key, k1, k2 = jax.random.split(key, 3)
        # weight_ih: xavier-normal-like
        w_ih = jax.random.normal(k1, (4 * H, din), jnp.float32) * np.sqrt(2.0 / (4 * H + din))
        # weight_hh: orthogonal (QR of a Gaussian)
        g = jax.random.normal(k2, (4 * H, H), jnp.float32)
        q, _ = jnp.linalg.qr(g)
        w_hh = q.astype(jnp.float32)
        # bias_ih: zeros with forget-gate slice [H:2H] = 1 ; bias_hh: zeros
        b_ih = jnp.zeros((4 * H,), jnp.float32).at[H:2 * H].set(1.0)
        b_hh = jnp.zeros((4 * H,), jnp.float32)
        params["lstm"].append((w_ih, w_hh, b_ih, b_hh))

    for f in range(F):
        fin = H if f == 0 else Fh
        key, k1, k2 = jax.random.split(key, 3)
        bound = 1.0 / np.sqrt(fin)
        w = jax.random.uniform(k1, (Fh, fin), jnp.float32, -bound, bound)
        b = jax.random.uniform(k2, (Fh,), jnp.float32, -bound, bound)
        params["fc"].append((w, b))

    key, k1, k2 = jax.random.split(key, 3)
    bound = 1.0 / np.sqrt(Fh)
    w_top = jax.random.uniform(k1, (Ftop, Fh), jnp.float32, -bound, bound)
    b_top = jax.random.uniform(k2, (Ftop,), jnp.float32, -bound, bound)
    params["fc_top"] = (w_top, b_top)
    return params


# ----------------------------- pure-JAX reference ---------------------------------
def reference_forward(x_ncl, params, cfg):
    H = cfg["lstm_hidden_dim"]
    x = jnp.transpose(x_ncl, (0, 2, 1))           # (B, T, D)
    B, T, _ = x.shape
    layer_in = x
    for (w_ih, w_hh, b_ih, b_hh) in params["lstm"]:
        h = jnp.zeros((B, H), jnp.float32)
        c = jnp.zeros((B, H), jnp.float32)
        outs = []
        for t in range(T):
            gates = layer_in[:, t, :] @ w_ih.T + h @ w_hh.T + b_ih + b_hh
            i_g = jax.nn.sigmoid(gates[:, 0:H])
            f_g = jax.nn.sigmoid(gates[:, H:2 * H])
            g_g = jnp.tanh(gates[:, 2 * H:3 * H])
            o_g = jax.nn.sigmoid(gates[:, 3 * H:4 * H])
            c = f_g * c + i_g * g_g
            h = o_g * jnp.tanh(c)
            outs.append(h)
        layer_in = jnp.stack(outs, axis=1)
    out = layer_in[:, -1, :]
    for (w, b) in params["fc"]:
        out = jnp.maximum(out @ w.T + b, 0.0)
    w_top, b_top = params["fc_top"]
    return out @ w_top.T + b_top


# ----------------------------- main ------------------------------------------------
if __name__ == "__main__":
    key = jax.random.PRNGKey(0)
    key, kx, kp = jax.random.split(key, 3)

    B = CFG["batch"]
    D = int(np.prod(CFG["input_size"]))
    T = CFG["seq_len"]

    x = jax.random.normal(kx, (B, D, T), jnp.float32)   # PyTorch NCL layout
    params = init_params(kp, CFG)

    # One-time packing, off the per-call path (per perf review).
    wf, wr = pack_params(params, CFG)

    forward = jax.jit(functools.partial(ud_lstm_ia_gp_forward, cfg=CFG))
    out = jax.block_until_ready(forward(x, wf, wr))

    ref = reference_forward(x, params, CFG)
    # bf16 MXU operands on the recurrent dots -> slightly relaxed tolerance.
    np.testing.assert_allclose(np.asarray(out), np.asarray(ref), rtol=2e-2, atol=2e-2)
    assert out.shape == (B, CFG["fc_top_dim"])

    print("KERNEL_OK")
</pallas_src>

<mosaic_0001>
module attributes {stable_mosaic.version = 11 : i64} {
  func.func @kernel(%arg0: memref<64x16xf32, #tpu.memory_space<vmem>>, %arg1: memref<117x128xf32, #tpu.memory_space<vmem>>, %arg2: memref<96x128xbf16, #tpu.memory_space<vmem>>, %arg3: memref<8x128xf32, #tpu.memory_space<vmem>>) attributes {dimension_semantics = [], scalar_prefetch = 0 : i64, scratch_operands = 0 : i64, tpu.core_type = #tpu.core_type<tc>} {
    %0 = tpu.iota {dimensions = array<i32: 1>} : vector<8x128xi32>
    %c64_i32 = arith.constant 64 : i32
    %1 = vector.broadcast %c64_i32 : i32 to vector<8x128xi32>
    %2 = arith.cmpi sge, %0, %1 : vector<8x128xi32>
    %c96_i32 = arith.constant 96 : i32
    %3 = vector.broadcast %c96_i32 : i32 to vector<8x128xi32>
    %4 = arith.cmpi slt, %0, %3 : vector<8x128xi32>
    %5 = arith.andi %2, %4 : vector<8x128xi1>
    %cst = arith.constant 2.000000e+00 : f32
    %cst_0 = arith.constant 1.000000e+00 : f32
    %6 = vector.broadcast %cst : f32 to vector<8x128xf32>
    %7 = vector.broadcast %cst_0 : f32 to vector<8x128xf32>
    %8 = arith.select %5, %6, %7 : vector<8x128xi1>, vector<8x128xf32>
    %cst_1 = arith.constant -1.000000e+00 : f32
    %cst_2 = arith.constant 0.000000e+00 : f32
    %9 = vector.broadcast %cst_1 : f32 to vector<8x128xf32>
    %10 = vector.broadcast %cst_2 : f32 to vector<8x128xf32>
    %11 = arith.select %5, %9, %10 : vector<8x128xi1>, vector<8x128xf32>
    %c16 = arith.constant 16 : index
    %c0 = arith.constant 0 : index
    %12 = vector.load %arg1[%c16, %c0] : memref<117x128xf32, #tpu.memory_space<vmem>>, vector<2x128xf32>
    %c0_3 = arith.constant 0 : index
    %c0_4 = arith.constant 0 : index
    %13 = vector.load %arg0[%c0_3, %c0_4] : memref<64x16xf32, #tpu.memory_space<vmem>>, vector<64x16xf32>
    %c0_5 = arith.constant 0 : index
    %c0_6 = arith.constant 0 : index
    %14 = vector.load %arg1[%c0_5, %c0_6] : memref<117x128xf32, #tpu.memory_space<vmem>>, vector<16x128xf32>
    %15 = vector.extract_strided_slice %12 {offsets = [0, 0], sizes = [1, 128], strides = [1, 1]} : vector<2x128xf32> to vector<1x128xf32>
    %16 = vector.shape_cast %15 : vector<1x128xf32> to vector<1x128xf32>
    %17 = vector.broadcast %16 : vector<1x128xf32> to vector<64x128xf32>
    %cst_7 = arith.constant dense<0.000000e+00> : vector<64x128xf32>
    %18 = tpu.matmul %13, %14, %cst_7 {dimension_numbers = #tpu.dot_dimension_numbers<[1], [0], [0], [1], [0, 0, 1, 1], [], []>} : vector<64x16xf32>, vector<16x128xf32>, vector<64x128xf32> -> vector<64x128xf32>
    %19 = arith.addf %18, %17 : vector<64x128xf32>
    %c0_8 = arith.constant 0 : index
    %c0_9 = arith.constant 0 : index
    %20 = vector.load %arg2[%c0_8, %c0_9] : memref<96x128xbf16, #tpu.memory_space<vmem>>, vector<32x128xbf16>
    %c32 = arith.constant 32 : index
    %c0_10 = arith.constant 0 : index
    %21 = vector.load %arg2[%c32, %c0_10] : memref<96x128xbf16, #tpu.memory_space<vmem>>, vector<64x128xbf16>
    %22 = vector.extract_strided_slice %12 {offsets = [1, 0], sizes = [1, 128], strides = [1, 1]} : vector<2x128xf32> to vector<1x128xf32>
    %23 = vector.shape_cast %22 : vector<1x128xf32> to vector<1x128xf32>
    %24 = vector.broadcast %23 : vector<1x128xf32> to vector<8x128xf32>
    %cst_11 = arith.constant 0.000000e+00 : f32
    %25 = vector.broadcast %cst_11 : f32 to vector<8x32xf32>
    %cst_12 = arith.constant 0.000000e+00 : f32
    %26 = vector.broadcast %cst_12 : f32 to vector<8x32xf32>
    %cst_13 = arith.constant 0.000000e+00 : f32
    %27 = vector.broadcast %cst_13 : f32 to vector<8x32xf32>
    %cst_14 = arith.constant 0.000000e+00 : f32
    %28 = vector.broadcast %cst_14 : f32 to vector<8x32xf32>
    %29 = vector.extract_strided_slice %19 {offsets = [0, 0], sizes = [8, 128], strides = [1, 1]} : vector<64x128xf32> to vector<8x128xf32>
    %30 = arith.truncf %25 : vector<8x32xf32> to vector<8x32xbf16>
    %cst_15 = arith.constant dense<0.000000e+00> : vector<8x128xf32>
    %31 = tpu.matmul %30, %20, %cst_15 {dimension_numbers = #tpu.dot_dimension_numbers<[1], [0], [0], [1], [0, 0, 1, 1], [], []>} : vector<8x32xbf16>, vector<32x128xbf16>, vector<8x128xf32> -> vector<8x128xf32>
    %32 = arith.addf %29, %31 : vector<8x128xf32>
    %33 = arith.mulf %32, %8 : vector<8x128xf32>
    %34 = arith.negf %33 : vector<8x128xf32>
    %35 = math.exp %34 : vector<8x128xf32>
    %cst_16 = arith.constant 1.000000e+00 : f32
    %36 = vector.broadcast %cst_16 : f32 to vector<8x128xf32>
    %37 = arith.addf %36, %35 : vector<8x128xf32>
    %38 = arith.divf %36, %37 : vector<8x128xf32>
    %39 = arith.mulf %38, %8 : vector<8x128xf32>
    %40 = arith.addf %39, %11 : vector<8x128xf32>
    %41 = vector.extract_strided_slice %40 {offsets = [0, 0], sizes = [8, 32], strides = [1, 1]} : vector<8x128xf32> to vector<8x32xf32>
    %42 = vector.extract_strided_slice %40 {offsets = [0, 32], sizes = [8, 32], strides = [1, 1]} : vector<8x128xf32> to vector<8x32xf32>
    %43 = vector.extract_strided_slice %40 {offsets = [0, 64], sizes = [8, 32], strides = [1, 1]} : vector<8x128xf32> to vector<8x32xf32>
    %44 = vector.extract_strided_slice %40 {offsets = [0, 96], sizes = [8, 32], strides = [1, 1]} : vector<8x128xf32> to vector<8x32xf32>
    %45 = arith.mulf %42, %27 : vector<8x32xf32>
    %46 = arith.mulf %41, %43 : vector<8x32xf32>
    %47 = arith.addf %45, %46 : vector<8x32xf32>
    %48 = math.tanh %47 : vector<8x32xf32>
    %49 = arith.mulf %44, %48 : vector<8x32xf32>
    %50 = tpu.concatenate %49, %26 in 1 : vector<8x32xf32>, vector<8x32xf32> -> vector<8x64xf32>
    %51 = arith.truncf %50 : vector<8x64xf32> to vector<8x64xbf16>
    %cst_17 = arith.constant dense<0.000000e+00> : vector<8x128xf32>
    %52 = tpu.matmul %51, %21, %cst_17 {dimension_numbers = #tpu.dot_dimension_numbers<[1], [0], [0], [1], [0, 0, 1, 1], [], []>} : vector<8x64xbf16>, vector<64x128xbf16>, vector<8x128xf32> -> vector<8x128xf32>
    %53 = arith.addf %52, %24 : vector<8x128xf32>
    %54 = arith.mulf %53, %8 : vector<8x128xf32>
    %55 = arith.negf %54 : vector<8x128xf32>
    %56 = math.exp %55 : vector<8x128xf32>
    %cst_18 = arith.constant 1.000000e+00 : f32
    %57 = vector.broadcast %cst_18 : f32 to vector<8x128xf32>
    %58 = arith.addf %57, %56 : vector<8x128xf32>
    %59 = arith.divf %57, %58 : vector<8x128xf32>
    %60 = arith.mulf %59, %8 : vector<8x128xf32>
    %61 = arith.addf %60, %11 : vector<8x128xf32>
    %62 = vector.extract_strided_slice %61 {offsets = [0, 0], sizes = [8, 32], strides = [1, 1]} : vector<8x128xf32> to vector<8x32xf32>
    %63 = vector.extract_strided_slice %61 {offsets = [0, 32], sizes = [8, 32], strides = [1, 1]} : vector<8x128xf32> to vector<8x32xf32>
    %64 = vector.extract_strided_slice %61 {offsets = [0, 64], sizes = [8, 32], strides = [1, 1]} : vector<8x128xf32> to vector<8x32xf32>
    %65 = vector.extract_strided_slice %61 {offsets = [0, 96], sizes = [8, 32], strides = [1, 1]} : vector<8x128xf32> to vector<8x32xf32>
    %66 = arith.mulf %63, %28 : vector<8x32xf32>
    %67 = arith.mulf %62, %64 : vector<8x32xf32>
    %68 = arith.addf %66, %67 : vector<8x32xf32>
    %69 = math.tanh %68 : vector<8x32xf32>
    %70 = arith.mulf %65, %69 : vector<8x32xf32>
    %71 = vector.extract_strided_slice %19 {offsets = [8, 0], sizes = [8, 128], strides = [1, 1]} : vector<64x128xf32> to vector<8x128xf32>
    %72 = arith.truncf %49 : vector<8x32xf32> to vector<8x32xbf16>
    %cst_19 = arith.constant dense<0.000000e+00> : vector<8x128xf32>
    %73 = tpu.matmul %72, %20, %cst_19 {dimension_numbers = #tpu.dot_dimension_numbers<[1], [0], [0], [1], [0, 0, 1, 1], [], []>} : vector<8x32xbf16>, vector<32x128xbf16>, vector<8x128xf32> -> vector<8x128xf32>
    %74 = arith.addf %71, %73 : vector<8x128xf32>
    %75 = arith.mulf %74, %8 : vector<8x128xf32>
    %76 = arith.negf %75 : vector<8x128xf32>
    %77 = math.exp %76 : vector<8x128xf32>
    %cst_20 = arith.constant 1.000000e+00 : f32
    %78 = vector.broadcast %cst_20 : f32 to vector<8x128xf32>
    %79 = arith.addf %78, %77 : vector<8x128xf32>
    %80 = arith.divf %78, %79 : vector<8x128xf32>
    %81 = arith.mulf %80, %8 : vector<8x128xf32>
    %82 = arith.addf %81, %11 : vector<8x128xf32>
    %83 = vector.extract_strided_slice %82 {offsets = [0, 0], sizes = [8, 32], strides = [1, 1]} : vector<8x128xf32> to vector<8x32xf32>
    %84 = vector.extract_strided_slice %82 {offsets = [0, 32], sizes = [8, 32], strides = [1, 1]} : vector<8x128xf32> to vector<8x32xf32>
    %85 = vector.extract_strided_slice %82 {offsets = [0, 64], sizes = [8, 32], strides = [1, 1]} : vector<8x128xf32> to vector<8x32xf32>
    %86 = vector.extract_strided_slice %82 {offsets = [0, 96], sizes = [8, 32], strides = [1, 1]} : vector<8x128xf32> to vector<8x32xf32>
    %87 = arith.mulf %84, %47 : vector<8x32xf32>
    %88 = arith.mulf %83, %85 : vector<8x32xf32>
    %89 = arith.addf %87, %88 : vector<8x32xf32>
    %90 = math.tanh %89 : vector<8x32xf32>
    %91 = arith.mulf %86, %90 : vector<8x32xf32>
    %92 = tpu.concatenate %91, %70 in 1 : vector<8x32xf32>, vector<8x32xf32> -> vector<8x64xf32>
    %93 = arith.truncf %92 : vector<8x64xf32> to vector<8x64xbf16>
    %cst_21 = arith.constant dense<0.000000e+00> : vector<8x128xf32>
    %94 = tpu.matmul %93, %21, %cst_21 {dimension_numbers = #tpu.dot_dimension_numbers<[1], [0], [0], [1], [0, 0, 1, 1], [], []>} : vector<8x64xbf16>, vector<64x128xbf16>, vector<8x128xf32> -> vector<8x128xf32>
    %95 = arith.addf %94, %24 : vector<8x128xf32>
    %96 = arith.mulf %95, %8 : vector<8x128xf32>
    %97 = arith.negf %96 : vector<8x128xf32>
    %98 = math.exp %97 : vector<8x128xf32>
    %cst_22 = arith.constant 1.000000e+00 : f32
    %99 = vector.broadcast %cst_22 : f32 to vector<8x128xf32>
    %100 = arith.addf %99, %98 : vector<8x128xf32>
    %101 = arith.divf %99, %100 : vector<8x128xf32>
    %102 = arith.mulf %101, %8 : vector<8x128xf32>
    %103 = arith.addf %102, %11 : vector<8x128xf32>
    %104 = vector.extract_strided_slice %103 {offsets = [0, 0], sizes = [8, 32], strides = [1, 1]} : vector<8x128xf32> to vector<8x32xf32>
    %105 = vector.extract_strided_slice %103 {offsets = [0, 32], sizes = [8, 32], strides = [1, 1]} : vector<8x128xf32> to vector<8x32xf32>
    %106 = vector.extract_strided_slice %103 {offsets = [0, 64], sizes = [8, 32], strides = [1, 1]} : vector<8x128xf32> to vector<8x32xf32>
    %107 = vector.extract_strided_slice %103 {offsets = [0, 96], sizes = [8, 32], strides = [1, 1]} : vector<8x128xf32> to vector<8x32xf32>
    %108 = arith.mulf %105, %68 : vector<8x32xf32>
    %109 = arith.mulf %104, %106 : vector<8x32xf32>
    %110 = arith.addf %108, %109 : vector<8x32xf32>
    %111 = math.tanh %110 : vector<8x32xf32>
    %112 = arith.mulf %107, %111 : vector<8x32xf32>
    %113 = vector.extract_strided_slice %19 {offsets = [16, 0], sizes = [8, 128], strides = [1, 1]} : vector<64x128xf32> to vector<8x128xf32>
    %114 = arith.truncf %91 : vector<8x32xf32> to vector<8x32xbf16>
    %cst_23 = arith.constant dense<0.000000e+00> : vector<8x128xf32>
    %115 = tpu.matmul %114, %20, %cst_23 {dimension_numbers = #tpu.dot_dimension_numbers<[1], [0], [0], [1], [0, 0, 1, 1], [], []>} : vector<8x32xbf16>, vector<32x128xbf16>, vector<8x128xf32> -> vector<8x128xf32>
    %116 = arith.addf %113, %115 : vector<8x128xf32>
    %117 = arith.mulf %116, %8 : vector<8x128xf32>
    %118 = arith.negf %117 : vector<8x128xf32>
    %119 = math.exp %118 : vector<8x128xf32>
    %cst_24 = arith.constant 1.000000e+00 : f32
    %120 = vector.broadcast %cst_24 : f32 to vector<8x128xf32>
    %121 = arith.addf %120, %119 : vector<8x128xf32>
    %122 = arith.divf %120, %121 : vector<8x128xf32>
    %123 = arith.mulf %122, %8 : vector<8x128xf32>
    %124 = arith.addf %123, %11 : vector<8x128xf32>
    %125 = vector.extract_strided_slice %124 {offsets = [0, 0], sizes = [8, 32], strides = [1, 1]} : vector<8x128xf32> to vector<8x32xf32>
    %126 = vector.extract_strided_slice %124 {offsets = [0, 32], sizes = [8, 32], strides = [1, 1]} : vector<8x128xf32> to vector<8x32xf32>
    %127 = vector.extract_strided_slice %124 {offsets = [0, 64], sizes = [8, 32], strides = [1, 1]} : vector<8x128xf32> to vector<8x32xf32>
    %128 = vector.extract_strided_slice %124 {offsets = [0, 96], sizes = [8, 32], strides = [1, 1]} : vector<8x128xf32> to vector<8x32xf32>
    %129 = arith.mulf %126, %89 : vector<8x32xf32>
    %130 = arith.mulf %125, %127 : vector<8x32xf32>
    %131 = arith.addf %129, %130 : vector<8x32xf32>
    %132 = math.tanh %131 : vector<8x32xf32>
    %133 = arith.mulf %128, %132 : vector<8x32xf32>
    %134 = tpu.concatenate %133, %112 in 1 : vector<8x32xf32>, vector<8x32xf32> -> vector<8x64xf32>
    %135 = arith.truncf %134 : vector<8x64xf32> to vector<8x64xbf16>
    %cst_25 = arith.constant dense<0.000000e+00> : vector<8x128xf32>
    %136 = tpu.matmul %135, %21, %cst_25 {dimension_numbers = #tpu.dot_dimension_numbers<[1], [0], [0], [1], [0, 0, 1, 1], [], []>} : vector<8x64xbf16>, vector<64x128xbf16>, vector<8x128xf32> -> vector<8x128xf32>
    %137 = arith.addf %136, %24 : vector<8x128xf32>
    %138 = arith.mulf %137, %8 : vector<8x128xf32>
    %139 = arith.negf %138 : vector<8x128xf32>
    %140 = math.exp %139 : vector<8x128xf32>
    %cst_26 = arith.constant 1.000000e+00 : f32
    %141 = vector.broadcast %cst_26 : f32 to vector<8x128xf32>
    %142 = arith.addf %141, %140 : vector<8x128xf32>
    %143 = arith.divf %141, %142 : vector<8x128xf32>
    %144 = arith.mulf %143, %8 : vector<8x128xf32>
    %145 = arith.addf %144, %11 : vector<8x128xf32>
    %146 = vector.extract_strided_slice %145 {offsets = [0, 0], sizes = [8, 32], strides = [1, 1]} : vector<8x128xf32> to vector<8x32xf32>
    %147 = vector.extract_strided_slice %145 {offsets = [0, 32], sizes = [8, 32], strides = [1, 1]} : vector<8x128xf32> to vector<8x32xf32>
    %148 = vector.extract_strided_slice %145 {offsets = [0, 64], sizes = [8, 32], strides = [1, 1]} : vector<8x128xf32> to vector<8x32xf32>
    %149 = vector.extract_strided_slice %145 {offsets = [0, 96], sizes = [8, 32], strides = [1, 1]} : vector<8x128xf32> to vector<8x32xf32>
    %150 = arith.mulf %147, %110 : vector<8x32xf32>
    %151 = arith.mulf %146, %148 : vector<8x32xf32>
    %152 = arith.addf %150, %151 : vector<8x32xf32>
    %153 = math.tanh %152 : vector<8x32xf32>
    %154 = arith.mulf %149, %153 : vector<8x32xf32>
    %155 = vector.extract_strided_slice %19 {offsets = [24, 0], sizes = [8, 128], strides = [1, 1]} : vector<64x128xf32> to vector<8x128xf32>
    %156 = arith.truncf %133 : vector<8x32xf32> to vector<8x32xbf16>
    %cst_27 = arith.constant dense<0.000000e+00> : vector<8x128xf32>
    %157 = tpu.matmul %156, %20, %cst_27 {dimension_numbers = #tpu.dot_dimension_numbers<[1], [0], [0], [1], [0, 0, 1, 1], [], []>} : vector<8x32xbf16>, vector<32x128xbf16>, vector<8x128xf32> -> vector<8x128xf32>
    %158 = arith.addf %155, %157 : vector<8x128xf32>
    %159 = arith.mulf %158, %8 : vector<8x128xf32>
    %160 = arith.negf %159 : vector<8x128xf32>
    %161 = math.exp %160 : vector<8x128xf32>
    %cst_28 = arith.constant 1.000000e+00 : f32
    %162 = vector.broadcast %cst_28 : f32 to vector<8x128xf32>
    %163 = arith.addf %162, %161 : vector<8x128xf32>
    %164 = arith.divf %162, %163 : vector<8x128xf32>
    %165 = arith.mulf %164, %8 : vector<8x128xf32>
    %166 = arith.addf %165, %11 : vector<8x128xf32>
    %167 = vector.extract_strided_slice %166 {offsets = [0, 0], sizes = [8, 32], strides = [1, 1]} : vector<8x128xf32> to vector<8x32xf32>
    %168 = vector.extract_strided_slice %166 {offsets = [0, 32], sizes = [8, 32], strides = [1, 1]} : vector<8x128xf32> to vector<8x32xf32>
    %169 = vector.extract_strided_slice %166 {offsets = [0, 64], sizes = [8, 32], strides = [1, 1]} : vector<8x128xf32> to vector<8x32xf32>
    %170 = vector.extract_strided_slice %166 {offsets = [0, 96], sizes = [8, 32], strides = [1, 1]} : vector<8x128xf32> to vector<8x32xf32>
    %171 = arith.mulf %168, %131 : vector<8x32xf32>
    %172 = arith.mulf %167, %169 : vector<8x32xf32>
    %173 = arith.addf %171, %172 : vector<8x32xf32>
    %174 = math.tanh %173 : vector<8x32xf32>
    %175 = arith.mulf %170, %174 : vector<8x32xf32>
    %176 = tpu.concatenate %175, %154 in 1 : vector<8x32xf32>, vector<8x32xf32> -> vector<8x64xf32>
    %177 = arith.truncf %176 : vector<8x64xf32> to vector<8x64xbf16>
    %cst_29 = arith.constant dense<0.000000e+00> : vector<8x128xf32>
    %178 = tpu.matmul %177, %21, %cst_29 {dimension_numbers = #tpu.dot_dimension_numbers<[1], [0], [0], [1], [0, 0, 1, 1], [], []>} : vector<8x64xbf16>, vector<64x128xbf16>, vector<8x128xf32> -> vector<8x128xf32>
    %179 = arith.addf %178, %24 : vector<8x128xf32>
    %180 = arith.mulf %179, %8 : vector<8x128xf32>
    %181 = arith.negf %180 : vector<8x128xf32>
    %182 = math.exp %181 : vector<8x128xf32>
    %cst_30 = arith.constant 1.000000e+00 : f32
    %183 = vector.broadcast %cst_30 : f32 to vector<8x128xf32>
    %184 = arith.addf %183, %182 : vector<8x128xf32>
    %185 = arith.divf %183, %184 : vector<8x128xf32>
    %186 = arith.mulf %185, %8 : vector<8x128xf32>
    %187 = arith.addf %186, %11 : vector<8x128xf32>
    %188 = vector.extract_strided_slice %187 {offsets = [0, 0], sizes = [8, 32], strides = [1, 1]} : vector<8x128xf32> to vector<8x32xf32>
    %189 = vector.extract_strided_slice %187 {offsets = [0, 32], sizes = [8, 32], strides = [1, 1]} : vector<8x128xf32> to vector<8x32xf32>
    %190 = vector.extract_strided_slice %187 {offsets = [0, 64], sizes = [8, 32], strides = [1, 1]} : vector<8x128xf32> to vector<8x32xf32>
    %191 = vector.extract_strided_slice %187 {offsets = [0, 96], sizes = [8, 32], strides = [1, 1]} : vector<8x128xf32> to vector<8x32xf32>
    %192 = arith.mulf %189, %152 : vector<8x32xf32>
    %193 = arith.mulf %188, %190 : vector<8x32xf32>
    %194 = arith.addf %192, %193 : vector<8x32xf32>
    %195 = math.tanh %194 : vector<8x32xf32>
    %196 = arith.mulf %191, %195 : vector<8x32xf32>
    %197 = vector.extract_strided_slice %19 {offsets = [32, 0], sizes = [8, 128], strides = [1, 1]} : vector<64x128xf32> to vector<8x128xf32>
    %198 = arith.truncf %175 : vector<8x32xf32> to vector<8x32xbf16>
    %cst_31 = arith.constant dense<0.000000e+00> : vector<8x128xf32>
    %199 = tpu.matmul %198, %20, %cst_31 {dimension_numbers = #tpu.dot_dimension_numbers<[1], [0], [0], [1], [0, 0, 1, 1], [], []>} : vector<8x32xbf16>, vector<32x128xbf16>, vector<8x128xf32> -> vector<8x128xf32>
    %200 = arith.addf %197, %199 : vector<8x128xf32>
    %201 = arith.mulf %200, %8 : vector<8x128xf32>
    %202 = arith.negf %201 : vector<8x128xf32>
    %203 = math.exp %202 : vector<8x128xf32>
    %cst_32 = arith.constant 1.000000e+00 : f32
    %204 = vector.broadcast %cst_32 : f32 to vector<8x128xf32>
    %205 = arith.addf %204, %203 : vector<8x128xf32>
    %206 = arith.divf %204, %205 : vector<8x128xf32>
    %207 = arith.mulf %206, %8 : vector<8x128xf32>
    %208 = arith.addf %207, %11 : vector<8x128xf32>
    %209 = vector.extract_strided_slice %208 {offsets = [0, 0], sizes = [8, 32], strides = [1, 1]} : vector<8x128xf32> to vector<8x32xf32>
    %210 = vector.extract_strided_slice %208 {offsets = [0, 32], sizes = [8, 32], strides = [1, 1]} : vector<8x128xf32> to vector<8x32xf32>
    %211 = vector.extract_strided_slice %208 {offsets = [0, 64], sizes = [8, 32], strides = [1, 1]} : vector<8x128xf32> to vector<8x32xf32>
    %212 = vector.extract_strided_slice %208 {offsets = [0, 96], sizes = [8, 32], strides = [1, 1]} : vector<8x128xf32> to vector<8x32xf32>
    %213 = arith.mulf %210, %173 : vector<8x32xf32>
    %214 = arith.mulf %209, %211 : vector<8x32xf32>
    %215 = arith.addf %213, %214 : vector<8x32xf32>
    %216 = math.tanh %215 : vector<8x32xf32>
    %217 = arith.mulf %212, %216 : vector<8x32xf32>
    %218 = tpu.concatenate %217, %196 in 1 : vector<8x32xf32>, vector<8x32xf32> -> vector<8x64xf32>
    %219 = arith.truncf %218 : vector<8x64xf32> to vector<8x64xbf16>
    %cst_33 = arith.constant dense<0.000000e+00> : vector<8x128xf32>
    %220 = tpu.matmul %219, %21, %cst_33 {dimension_numbers = #tpu.dot_dimension_numbers<[1], [0], [0], [1], [0, 0, 1, 1], [], []>} : vector<8x64xbf16>, vector<64x128xbf16>, vector<8x128xf32> -> vector<8x128xf32>
    %221 = arith.addf %220, %24 : vector<8x128xf32>
    %222 = arith.mulf %221, %8 : vector<8x128xf32>
    %223 = arith.negf %222 : vector<8x128xf32>
    %224 = math.exp %223 : vector<8x128xf32>
    %cst_34 = arith.constant 1.000000e+00 : f32
    %225 = vector.broadcast %cst_34 : f32 to vector<8x128xf32>
    %226 = arith.addf %225, %224 : vector<8x128xf32>
    %227 = arith.divf %225, %226 : vector<8x128xf32>
    %228 = arith.mulf %227, %8 : vector<8x128xf32>
    %229 = arith.addf %228, %11 : vector<8x128xf32>
    %230 = vector.extract_strided_slice %229 {offsets = [0, 0], sizes = [8, 32], strides = [1, 1]} : vector<8x128xf32> to vector<8x32xf32>
    %231 = vector.extract_strided_slice %229 {offsets = [0, 32], sizes = [8, 32], strides = [1, 1]} : vector<8x128xf32> to vector<8x32xf32>
    %232 = vector.extract_strided_slice %229 {offsets = [0, 64], sizes = [8, 32], strides = [1, 1]} : vector<8x128xf32> to vector<8x32xf32>
    %233 = vector.extract_strided_slice %229 {offsets = [0, 96], sizes = [8, 32], strides = [1, 1]} : vector<8x128xf32> to vector<8x32xf32>
    %234 = arith.mulf %231, %194 : vector<8x32xf32>
    %235 = arith.mulf %230, %232 : vector<8x32xf32>
    %236 = arith.addf %234, %235 : vector<8x32xf32>
    %237 = math.tanh %236 : vector<8x32xf32>
    %238 = arith.mulf %233, %237 : vector<8x32xf32>
    %239 = vector.extract_strided_slice %19 {offsets = [40, 0], sizes = [8, 128], strides = [1, 1]} : vector<64x128xf32> to vector<8x128xf32>
    %240 = arith.truncf %217 : vector<8x32xf32> to vector<8x32xbf16>
    %cst_35 = arith.constant dense<0.000000e+00> : vector<8x128xf32>
    %241 = tpu.matmul %240, %20, %cst_35 {dimension_numbers = #tpu.dot_dimension_numbers<[1], [0], [0], [1], [0, 0, 1, 1], [], []>} : vector<8x32xbf16>, vector<32x128xbf16>, vector<8x128xf32> -> vector<8x128xf32>
    %242 = arith.addf %239, %241 : vector<8x128xf32>
    %243 = arith.mulf %242, %8 : vector<8x128xf32>
    %244 = arith.negf %243 : vector<8x128xf32>
    %245 = math.exp %244 : vector<8x128xf32>
    %cst_36 = arith.constant 1.000000e+00 : f32
    %246 = vector.broadcast %cst_36 : f32 to vector<8x128xf32>
    %247 = arith.addf %246, %245 : vector<8x128xf32>
    %248 = arith.divf %246, %247 : vector<8x128xf32>
    %249 = arith.mulf %248, %8 : vector<8x128xf32>
    %250 = arith.addf %249, %11 : vector<8x128xf32>
    %251 = vector.extract_strided_slice %250 {offsets = [0, 0], sizes = [8, 32], strides = [1, 1]} : vector<8x128xf32> to vector<8x32xf32>
    %252 = vector.extract_strided_slice %250 {offsets = [0, 32], sizes = [8, 32], strides = [1, 1]} : vector<8x128xf32> to vector<8x32xf32>
    %253 = vector.extract_strided_slice %250 {offsets = [0, 64], sizes = [8, 32], strides = [1, 1]} : vector<8x128xf32> to vector<8x32xf32>
    %254 = vector.extract_strided_slice %250 {offsets = [0, 96], sizes = [8, 32], strides = [1, 1]} : vector<8x128xf32> to vector<8x32xf32>
    %255 = arith.mulf %252, %215 : vector<8x32xf32>
    %256 = arith.mulf %251, %253 : vector<8x32xf32>
    %257 = arith.addf %255, %256 : vector<8x32xf32>
    %258 = math.tanh %257 : vector<8x32xf32>
    %259 = arith.mulf %254, %258 : vector<8x32xf32>
    %260 = tpu.concatenate %259, %238 in 1 : vector<8x32xf32>, vector<8x32xf32> -> vector<8x64xf32>
    %261 = arith.truncf %260 : vector<8x64xf32> to vector<8x64xbf16>
    %cst_37 = arith.constant dense<0.000000e+00> : vector<8x128xf32>
    %262 = tpu.matmul %261, %21, %cst_37 {dimension_numbers = #tpu.dot_dimension_numbers<[1], [0], [0], [1], [0, 0, 1, 1], [], []>} : vector<8x64xbf16>, vector<64x128xbf16>, vector<8x128xf32> -> vector<8x128xf32>
    %263 = arith.addf %262, %24 : vector<8x128xf32>
    %264 = arith.mulf %263, %8 : vector<8x128xf32>
    %265 = arith.negf %264 : vector<8x128xf32>
    %266 = math.exp %265 : vector<8x128xf32>
    %cst_38 = arith.constant 1.000000e+00 : f32
    %267 = vector.broadcast %cst_38 : f32 to vector<8x128xf32>
    %268 = arith.addf %267, %266 : vector<8x128xf32>
    %269 = arith.divf %267, %268 : vector<8x128xf32>
    %270 = arith.mulf %269, %8 : vector<8x128xf32>
    %271 = arith.addf %270, %11 : vector<8x128xf32>
    %272 = vector.extract_strided_slice %271 {offsets = [0, 0], sizes = [8, 32], strides = [1, 1]} : vector<8x128xf32> to vector<8x32xf32>
    %273 = vector.extract_strided_slice %271 {offsets = [0, 32], sizes = [8, 32], strides = [1, 1]} : vector<8x128xf32> to vector<8x32xf32>
    %274 = vector.extract_strided_slice %271 {offsets = [0, 64], sizes = [8, 32], strides = [1, 1]} : vector<8x128xf32> to vector<8x32xf32>
    %275 = vector.extract_strided_slice %271 {offsets = [0, 96], sizes = [8, 32], strides = [1, 1]} : vector<8x128xf32> to vector<8x32xf32>
    %276 = arith.mulf %273, %236 : vector<8x32xf32>
    %277 = arith.mulf %272, %274 : vector<8x32xf32>
    %278 = arith.addf %276, %277 : vector<8x32xf32>
    %279 = math.tanh %278 : vector<8x32xf32>
    %280 = arith.mulf %275, %279 : vector<8x32xf32>
    %281 = vector.extract_strided_slice %19 {offsets = [48, 0], sizes = [8, 128], strides = [1, 1]} : vector<64x128xf32> to vector<8x128xf32>
    %282 = arith.truncf %259 : vector<8x32xf32> to vector<8x32xbf16>
    %cst_39 = arith.constant dense<0.000000e+00> : vector<8x128xf32>
    %283 = tpu.matmul %282, %20, %cst_39 {dimension_numbers = #tpu.dot_dimension_numbers<[1], [0], [0], [1], [0, 0, 1, 1], [], []>} : vector<8x32xbf16>, vector<32x128xbf16>, vector<8x128xf32> -> vector<8x128xf32>
    %284 = arith.addf %281, %283 : vector<8x128xf32>
    %285 = arith.mulf %284, %8 : vector<8x128xf32>
    %286 = arith.negf %285 : vector<8x128xf32>
    %287 = math.exp %286 : vector<8x128xf32>
    %cst_40 = arith.constant 1.000000e+00 : f32
    %288 = vector.broadcast %cst_40 : f32 to vector<8x128xf32>
    %289 = arith.addf %288, %287 : vector<8x128xf32>
    %290 = arith.divf %288, %289 : vector<8x128xf32>
    %291 = arith.mulf %290, %8 : vector<8x128xf32>
    %292 = arith.addf %291, %11 : vector<8x128xf32>
    %293 = vector.extract_strided_slice %292 {offsets = [0, 0], sizes = [8, 32], strides = [1, 1]} : vector<8x128xf32> to vector<8x32xf32>
    %294 = vector.extract_strided_slice %292 {offsets = [0, 32], sizes = [8, 32], strides = [1, 1]} : vector<8x128xf32> to vector<8x32xf32>
    %295 = vector.extract_strided_slice %292 {offsets = [0, 64], sizes = [8, 32], strides = [1, 1]} : vector<8x128xf32> to vector<8x32xf32>
    %296 = vector.extract_strided_slice %292 {offsets = [0, 96], sizes = [8, 32], strides = [1, 1]} : vector<8x128xf32> to vector<8x32xf32>
    %297 = arith.mulf %294, %257 : vector<8x32xf32>
    %298 = arith.mulf %293, %295 : vector<8x32xf32>
    %299 = arith.addf %297, %298 : vector<8x32xf32>
    %300 = math.tanh %299 : vector<8x32xf32>
    %301 = arith.mulf %296, %300 : vector<8x32xf32>
    %302 = tpu.concatenate %301, %280 in 1 : vector<8x32xf32>, vector<8x32xf32> -> vector<8x64xf32>
    %303 = arith.truncf %302 : vector<8x64xf32> to vector<8x64xbf16>
    %cst_41 = arith.constant dense<0.000000e+00> : vector<8x128xf32>
    %304 = tpu.matmul %303, %21, %cst_41 {dimension_numbers = #tpu.dot_dimension_numbers<[1], [0], [0], [1], [0, 0, 1, 1], [], []>} : vector<8x64xbf16>, vector<64x128xbf16>, vector<8x128xf32> -> vector<8x128xf32>
    %305 = arith.addf %304, %24 : vector<8x128xf32>
    %306 = arith.mulf %305, %8 : vector<8x128xf32>
    %307 = arith.negf %306 : vector<8x128xf32>
    %308 = math.exp %307 : vector<8x128xf32>
    %cst_42 = arith.constant 1.000000e+00 : f32
    %309 = vector.broadcast %cst_42 : f32 to vector<8x128xf32>
    %310 = arith.addf %309, %308 : vector<8x128xf32>
    %311 = arith.divf %309, %310 : vector<8x128xf32>
    %312 = arith.mulf %311, %8 : vector<8x128xf32>
    %313 = arith.addf %312, %11 : vector<8x128xf32>
    %314 = vector.extract_strided_slice %313 {offsets = [0, 0], sizes = [8, 32], strides = [1, 1]} : vector<8x128xf32> to vector<8x32xf32>
    %315 = vector.extract_strided_slice %313 {offsets = [0, 32], sizes = [8, 32], strides = [1, 1]} : vector<8x128xf32> to vector<8x32xf32>
    %316 = vector.extract_strided_slice %313 {offsets = [0, 64], sizes = [8, 32], strides = [1, 1]} : vector<8x128xf32> to vector<8x32xf32>
    %317 = vector.extract_strided_slice %313 {offsets = [0, 96], sizes = [8, 32], strides = [1, 1]} : vector<8x128xf32> to vector<8x32xf32>
    %318 = arith.mulf %315, %278 : vector<8x32xf32>
    %319 = arith.mulf %314, %316 : vector<8x32xf32>
    %320 = arith.addf %318, %319 : vector<8x32xf32>
    %321 = math.tanh %320 : vector<8x32xf32>
    %322 = arith.mulf %317, %321 : vector<8x32xf32>
    %323 = vector.extract_strided_slice %19 {offsets = [56, 0], sizes = [8, 128], strides = [1, 1]} : vector<64x128xf32> to vector<8x128xf32>
    %324 = arith.truncf %301 : vector<8x32xf32> to vector<8x32xbf16>
    %cst_43 = arith.constant dense<0.000000e+00> : vector<8x128xf32>
    %325 = tpu.matmul %324, %20, %cst_43 {dimension_numbers = #tpu.dot_dimension_numbers<[1], [0], [0], [1], [0, 0, 1, 1], [], []>} : vector<8x32xbf16>, vector<32x128xbf16>, vector<8x128xf32> -> vector<8x128xf32>
    %326 = arith.addf %323, %325 : vector<8x128xf32>
    %327 = arith.mulf %326, %8 : vector<8x128xf32>
    %328 = arith.negf %327 : vector<8x128xf32>
    %329 = math.exp %328 : vector<8x128xf32>
    %cst_44 = arith.constant 1.000000e+00 : f32
    %330 = vector.broadcast %cst_44 : f32 to vector<8x128xf32>
    %331 = arith.addf %330, %329 : vector<8x128xf32>
    %332 = arith.divf %330, %331 : vector<8x128xf32>
    %333 = arith.mulf %332, %8 : vector<8x128xf32>
    %334 = arith.addf %333, %11 : vector<8x128xf32>
    %335 = vector.extract_strided_slice %334 {offsets = [0, 0], sizes = [8, 32], strides = [1, 1]} : vector<8x128xf32> to vector<8x32xf32>
    %336 = vector.extract_strided_slice %334 {offsets = [0, 32], sizes = [8, 32], strides = [1, 1]} : vector<8x128xf32> to vector<8x32xf32>
    %337 = vector.extract_strided_slice %334 {offsets = [0, 64], sizes = [8, 32], strides = [1, 1]} : vector<8x128xf32> to vector<8x32xf32>
    %338 = vector.extract_strided_slice %334 {offsets = [0, 96], sizes = [8, 32], strides = [1, 1]} : vector<8x128xf32> to vector<8x32xf32>
    %339 = arith.mulf %336, %299 : vector<8x32xf32>
    %340 = arith.mulf %335, %337 : vector<8x32xf32>
    %341 = arith.addf %339, %340 : vector<8x32xf32>
    %342 = math.tanh %341 : vector<8x32xf32>
    %343 = arith.mulf %338, %342 : vector<8x32xf32>
    %344 = tpu.concatenate %343, %322 in 1 : vector<8x32xf32>, vector<8x32xf32> -> vector<8x64xf32>
    %345 = arith.truncf %344 : vector<8x64xf32> to vector<8x64xbf16>
    %cst_45 = arith.constant dense<0.000000e+00> : vector<8x128xf32>
    %346 = tpu.matmul %345, %21, %cst_45 {dimension_numbers = #tpu.dot_dimension_numbers<[1], [0], [0], [1], [0, 0, 1, 1], [], []>} : vector<8x64xbf16>, vector<64x128xbf16>, vector<8x128xf32> -> vector<8x128xf32>
    %347 = arith.addf %346, %24 : vector<8x128xf32>
    %348 = arith.mulf %347, %8 : vector<8x128xf32>
    %349 = arith.negf %348 : vector<8x128xf32>
    %350 = math.exp %349 : vector<8x128xf32>
    %cst_46 = arith.constant 1.000000e+00 : f32
    %351 = vector.broadcast %cst_46 : f32 to vector<8x128xf32>
    %352 = arith.addf %351, %350 : vector<8x128xf32>
    %353 = arith.divf %351, %352 : vector<8x128xf32>
    %354 = arith.mulf %353, %8 : vector<8x128xf32>
    %355 = arith.addf %354, %11 : vector<8x128xf32>
    %356 = vector.extract_strided_slice %355 {offsets = [0, 0], sizes = [8, 32], strides = [1, 1]} : vector<8x128xf32> to vector<8x32xf32>
    %357 = vector.extract_strided_slice %355 {offsets = [0, 32], sizes = [8, 32], strides = [1, 1]} : vector<8x128xf32> to vector<8x32xf32>
    %358 = vector.extract_strided_slice %355 {offsets = [0, 64], sizes = [8, 32], strides = [1, 1]} : vector<8x128xf32> to vector<8x32xf32>
    %359 = vector.extract_strided_slice %355 {offsets = [0, 96], sizes = [8, 32], strides = [1, 1]} : vector<8x128xf32> to vector<8x32xf32>
    %360 = arith.mulf %357, %320 : vector<8x32xf32>
    %361 = arith.mulf %356, %358 : vector<8x32xf32>
    %362 = arith.addf %360, %361 : vector<8x32xf32>
    %363 = math.tanh %362 : vector<8x32xf32>
    %364 = arith.mulf %359, %363 : vector<8x32xf32>
    %c18 = arith.constant 18 : index
    %c0_47 = arith.constant 0 : index
    %365 = vector.load %arg1[%c18, %c0_47] : memref<117x128xf32, #tpu.memory_space<vmem>>, vector<32x128xf32>
    %cst_48 = arith.constant dense<0.000000e+00> : vector<8x128xf32>
    %366 = tpu.matmul %364, %365, %cst_48 {dimension_numbers = #tpu.dot_dimension_numbers<[1], [0], [0], [1], [0, 0, 1, 1], [], []>} : vector<8x32xf32>, vector<32x128xf32>, vector<8x128xf32> -> vector<8x128xf32>
    %c114 = arith.constant 114 : index
    %c0_49 = arith.constant 0 : index
    %367 = vector.load %arg1[%c114, %c0_49] : memref<117x128xf32, #tpu.memory_space<vmem>>, vector<1x128xf32>
    %368 = vector.broadcast %367 : vector<1x128xf32> to vector<8x128xf32>
    %369 = arith.addf %366, %368 : vector<8x128xf32>
    %cst_50 = arith.constant 0.000000e+00 : f32
    %370 = vector.broadcast %cst_50 : f32 to vector<8x128xf32>
    %371 = arith.maximumf %369, %370 : vector<8x128xf32>
    %c50 = arith.constant 50 : index
    %c0_51 = arith.constant 0 : index
    %372 = vector.load %arg1[%c50, %c0_51] : memref<117x128xf32, #tpu.memory_space<vmem>>, vector<32x128xf32>
    %373 = vector.extract_strided_slice %371 {offsets = [0, 0], sizes = [8, 32], strides = [1, 1]} : vector<8x128xf32> to vector<8x32xf32>
    %cst_52 = arith.constant dense<0.000000e+00> : vector<8x128xf32>
    %374 = tpu.matmul %373, %372, %cst_52 {dimension_numbers = #tpu.dot_dimension_numbers<[1], [0], [0], [1], [0, 0, 1, 1], [], []>} : vector<8x32xf32>, vector<32x128xf32>, vector<8x128xf32> -> vector<8x128xf32>
    %c115 = arith.constant 115 : index
    %c0_53 = arith.constant 0 : index
    %375 = vector.load %arg1[%c115, %c0_53] : memref<117x128xf32, #tpu.memory_space<vmem>>, vector<1x128xf32>
    %376 = vector.broadcast %375 : vector<1x128xf32> to vector<8x128xf32>
    %377 = arith.addf %374, %376 : vector<8x128xf32>
    %cst_54 = arith.constant 0.000000e+00 : f32
    %378 = vector.broadcast %cst_54 : f32 to vector<8x128xf32>
    %379 = arith.maximumf %377, %378 : vector<8x128xf32>
    %c82 = arith.constant 82 : index
    %c0_55 = arith.constant 0 : index
    %380 = vector.load %arg1[%c82, %c0_55] : memref<117x128xf32, #tpu.memory_space<vmem>>, vector<32x128xf32>
    %381 = vector.extract_strided_slice %379 {offsets = [0, 0], sizes = [8, 32], strides = [1, 1]} : vector<8x128xf32> to vector<8x32xf32>
    %cst_56 = arith.constant dense<0.000000e+00> : vector<8x128xf32>
    %382 = tpu.matmul %381, %380, %cst_56 {dimension_numbers = #tpu.dot_dimension_numbers<[1], [0], [0], [1], [0, 0, 1, 1], [], []>} : vector<8x32xf32>, vector<32x128xf32>, vector<8x128xf32> -> vector<8x128xf32>
    %c116 = arith.constant 116 : index
    %c0_57 = arith.constant 0 : index
    %383 = vector.load %arg1[%c116, %c0_57] : memref<117x128xf32, #tpu.memory_space<vmem>>, vector<1x128xf32>
    %384 = vector.broadcast %383 : vector<1x128xf32> to vector<8x128xf32>
    %385 = arith.addf %382, %384 : vector<8x128xf32>
    %c0_58 = arith.constant 0 : index
    %c0_59 = arith.constant 0 : index
    %386 = vector.load %arg3[%c0_58, %c0_59] : memref<8x128xf32, #tpu.memory_space<vmem>>, vector<8x128xf32>
    tpu.vector_store %arg3[%c0_58, %c0_59], %385 {strides = array<i32>} : memref<8x128xf32, #tpu.memory_space<vmem>>, vector<8x128xf32>,
    return
  }
}

</mosaic_0001>

<llo_original>
// kernel: ud_lstm_ia_gp_forward.1
$region0: #{ud_lstm_ia_gp_forward.1}
  #allocation0 [shape = 'u32[]', space=smem, size = 0x4, offset = 0x4, fixed_abs, tag = 'smem constant byte address 0x4 - core index']
  #allocation1 [shape = 'u32[144,128]{1,0:T(1,128)}', space=vmem, size = 0x12000, scoped, tag = 'internal scratch']
  %s0 = inlined_call_operand.vmem [shape: f32[64,16], index: 0, kind: input, shape index: {}]
  %s1 = inlined_call_operand.vmem [shape: f32[117,128], index: 1, kind: input, shape index: {}]
  %s2 = inlined_call_operand.vmem [shape: bf16[96,128], index: 2, kind: input, shape index: {}]
  %s3 = inlined_call_operand.vmem [shape: f32[8,128], index: 3, kind: output, shape index: {}]
  %s4 = sld [smem:[#allocation0]]
  $region22: #{ud_lstm_ia_gp_forward.1} parent=0
    _
  %s6 = ssub.s32 1, %s4
  %s7 = scalar_select 0, %s6, %s4
  // Predicated region
  $region2: #{ud_lstm_ia_gp_forward.1} parent=0 // pred_check
    _
  $region3: #{ud_lstm_ia_gp_forward.1} parent=0 // pred_check_branch
    %9 = sbr.rel (0) target = $region5
  $region4: #{ud_lstm_ia_gp_forward.1} parent=0 // pred_region
    _
  $region5: #{ud_lstm_ia_gp_forward.1} parent=0 // pred_fallthru
    _
  // Predicated region
  $region6: #{ud_lstm_ia_gp_forward.1} parent=0 // pred_check
    _
  $region7: #{ud_lstm_ia_gp_forward.1} parent=0 // pred_check_branch
    %11 = sbr.rel (0) target = $region9
  $region8: #{ud_lstm_ia_gp_forward.1} parent=0 // pred_region
    _
  $region9: #{ud_lstm_ia_gp_forward.1} parent=0 // pred_fallthru
    _
  // Predicated region
  $region10: #{ud_lstm_ia_gp_forward.1} parent=0 // pred_check
    _
  $region11: #{ud_lstm_ia_gp_forward.1} parent=0 // pred_check_branch
    %13 = sbr.rel (0) target = $region13
  $region12: #{ud_lstm_ia_gp_forward.1} parent=0 // pred_region
    _
  $region13: #{ud_lstm_ia_gp_forward.1} parent=0 // pred_fallthru
    _
  %v15 = vlaneseq
  %v16 = vand.u32 %v15, 127
  %vm17 = vcmp.ge.s32.totalorder %v16, 64
  %vm18 = vcmp.lt.s32.totalorder %v16, 96
  %vm19 = vmand %vm17, %vm18
  %v20 = vsel %vm19, 2.0, 1.0
  %v21 = vsel %vm19, -1.0, 0.0
  %v22 = vld [vmem:[%s1 + $0x10] sm:$0x3]
  %v23 = vld [vmem:[%s0] sm:$0xff]
  %v24 = vld [vmem:[%s0 + $0x8] sm:$0xff]
  %v25 = vld [vmem:[%s0 + $0x10] sm:$0xff]
  %v26 = vld [vmem:[%s0 + $0x18] sm:$0xff]
  %v27 = vld [vmem:[%s0 + $0x20] sm:$0xff]
  %v28 = vld [vmem:[%s0 + $0x28] sm:$0xff]
  %v29 = vld [vmem:[%s0 + $0x30] sm:$0xff]
  %v30 = vld [vmem:[%s0 + $0x38] sm:$0xff]
  %v31 = vld [vmem:[%s1] sm:$0xff]
  %v32 = vld [vmem:[%s1 + $0x8] sm:$0xff]
  %v33 = vlaneseq
  %v34 = vshrl.u32 %v33, 7
  %v35 = vsub.s32 0, %v34
  %v36 = vrot.slane %v22, %v35
  %vm37 = vcmask 130048
  %v39 = vsel %vm37, %v23, 0
  %v42 = vsel %vm37, %v24, 0
  %v45 = vsel %vm37, %v25, 0
  %v48 = vsel %vm37, %v26, 0
  %v51 = vsel %vm37, %v27, 0
  %v54 = vsel %vm37, %v28, 0
  %v57 = vsel %vm37, %v29, 0
  %v60 = vsel %vm37, %v30, 0
  %62 = vmatprep.subr.mxu0 0.0
  %63 = vmatpush1.msra.mxu0 %v31
  %64 = vmatprep.subr.mxu0 0.0
  %65 = vmatpush1.msra.mxu0 %v32
  %66 = vmatprep.subr.mxu0 0.0
  %67 = vmatpush1.msra.mxu0 0.0
  %68 = vmatprep.subr.mxu0 0.0
  %69 = vmatpush1.msra.mxu0 0.0
  %70 = vmatprep.subr.mxu0 0.0
  %71 = vmatpush1.msra.mxu0 0.0
  %72 = vmatprep.subr.mxu0 0.0
  %73 = vmatpush1.msra.mxu0 0.0
  %74 = vmatprep.subr.mxu0 0.0
  %75 = vmatpush1.msra.mxu0 0.0
  %76 = vmatprep.subr.mxu0 0.0
  %77 = vmatpush1.msra.mxu0 0.0
  %78 = vmatprep.subr.mxu0 0.0
  %79 = vmatpush1.msra.mxu0 0.0
  %80 = vmatprep.subr.mxu0 0.0
  %81 = vmatpush1.msra.mxu0 0.0
  %82 = vmatprep.subr.mxu0 0.0
  %83 = vmatpush1.msra.mxu0 0.0
  %84 = vmatprep.subr.mxu0 0.0
  %85 = vmatpush1.msra.mxu0 0.0
  %86 = vmatprep.subr.mxu0 0.0
  %87 = vmatpush1.msra.mxu0 0.0
  %88 = vmatprep.subr.mxu0 0.0
  %89 = vmatpush1.msra.mxu0 0.0
  %90 = vmatprep.subr.mxu0 0.0
  %91 = vmatpush1.msra.mxu0 0.0
  %92 = vmatprep.subr.mxu0 0.0
  %93 = vmatpush1.msra.mxu0 0.0
  %94 = vmatprep.subr.mxu0 0.0
  %95 = vmatpush1.msra.mxu0 0.0
  %96 = vmatprep.subr.mxu0 0.0
  %97 = vmatpush1.msra.mxu0 0.0
  %98 = vmatprep.subr.mxu0 0.0
  %99 = vmatpush1.msra.mxu0 0.0
  %100 = vmatprep.subr.mxu0 0.0
  %101 = vmatpush1.msra.mxu0 0.0
  %102 = vmatprep.subr.mxu0 0.0
  %103 = vmatpush1.msra.mxu0 0.0
  %104 = vmatprep.subr.mxu0 0.0
  %105 = vmatpush1.msra.mxu0 0.0
  %106 = vmatprep.subr.mxu0 0.0
  %107 = vmatpush1.msra.mxu0 0.0
  %108 = vmatprep.subr.mxu0 0.0
  %109 = vmatpush1.msra.mxu0 0.0
  %110 = vmatprep.subr.mxu0 0.0
  %111 = vmatpush1.msra.mxu0 0.0
  %112 = vmatprep.subr.mxu0 0.0
  %113 = vmatpush1.msra.mxu0 0.0
  %114 = vmatprep.subr.mxu0 0.0
  %115 = vmatpush1.msra.mxu0 0.0
  %116 = vmatprep.subr.mxu0 0.0
  %117 = vmatpush1.msra.mxu0 0.0
  %118 = vmatprep.subr.mxu0 0.0
  %119 = vmatpush1.msra.mxu0 0.0
  %120 = vmatprep.subr.mxu0 0.0
  %121 = vmatpush1.msra.mxu0 0.0
  %122 = vmatprep.subr.mxu0 0.0
  %123 = vmatpush1.msra.mxu0 0.0
  %124 = vmatprep.subr.mxu0 0.0
  %125 = vmatpush1.msra.mxu0 0.0
  %126 = vmatprep.mubr.f32.mxu0 0.0
  %127 = vmatmul.mubr.f32.gmra.mrb[0].mxu0 %v39
  %v128 = vpop.f32.mrb[0].mxu0
  %v129 = vadd.f32 %v36, %v128
  %v130 = vpop.f32.mrb[0].mxu0
  %131 = vmatprep.mubr.f32.mxu0 0.0
  %132 = vmatmul.mubr.f32.gmra.mrb[0].mxu0 %v42
  %v133 = vpop.f32.mrb[0].mxu0
  %v134 = vadd.f32 %v36, %v133
  %v135 = vpop.f32.mrb[0].mxu0
  %136 = vmatprep.mubr.f32.mxu0 0.0
  %137 = vmatmul.mubr.f32.gmra.mrb[0].mxu0 %v45
  %v138 = vpop.f32.mrb[0].mxu0
  %v139 = vadd.f32 %v36, %v138
  %v140 = vpop.f32.mrb[0].mxu0
  %141 = vmatprep.mubr.f32.mxu0 0.0
  %142 = vmatmul.mubr.f32.gmra.mrb[0].mxu0 %v48
  %v143 = vpop.f32.mrb[0].mxu0
  %v144 = vadd.f32 %v36, %v143
  %v145 = vpop.f32.mrb[0].mxu0
  %146 = vmatprep.mubr.f32.mxu0 0.0
  %147 = vmatmul.mubr.f32.gmra.mrb[0].mxu0 %v51
  %v148 = vpop.f32.mrb[0].mxu0
  %v149 = vadd.f32 %v36, %v148
  %v150 = vpop.f32.mrb[0].mxu0
  %151 = vmatprep.mubr.f32.mxu0 0.0
  %152 = vmatmul.mubr.f32.gmra.mrb[0].mxu0 %v54
  %v153 = vpop.f32.mrb[0].mxu0
  %v154 = vadd.f32 %v36, %v153
  %v155 = vpop.f32.mrb[0].mxu0
  %156 = vmatprep.mubr.f32.mxu0 0.0
  %157 = vmatmul.mubr.f32.gmra.mrb[0].mxu0 %v57
  %v158 = vpop.f32.mrb[0].mxu0
  %v159 = vadd.f32 %v36, %v158
  %v160 = vpop.f32.mrb[0].mxu0
  %161 = vmatprep.mubr.f32.mxu0 0.0
  %162 = vmatmul.mubr.f32.gmra.mrb[0].mxu0 %v60
  %v163 = vpop.f32.mrb[0].mxu0
  %v164 = vadd.f32 %v36, %v163
  %v165 = vpop.f32.mrb[0].mxu0
  %166 = vdwg.mxu0
  %v167 = vld [vmem:[%s2] sm:$0xf]
  %v168 = vld [vmem:[%s2 + $0x4] sm:$0xf]
  %v169 = vld [vmem:[%s2 + $0x8] sm:$0xf]
  %v170 = vld [vmem:[%s2 + $0xc] sm:$0xf]
  %v171 = vld [vmem:[%s2 + $0x10] sm:$0xf]
  %v172 = vld [vmem:[%s2 + $0x14] sm:$0xf]
  %v173 = vld [vmem:[%s2 + $0x18] sm:$0xf]
  %v174 = vld [vmem:[%s2 + $0x1c] sm:$0xf]
  %v175 = vld [vmem:[%s2 + $0x20] sm:$0xf]
  %v176 = vld [vmem:[%s2 + $0x24] sm:$0xf]
  %v177 = vld [vmem:[%s2 + $0x28] sm:$0xf]
  %v178 = vld [vmem:[%s2 + $0x2c] sm:$0xf]
  %v179 = vlaneseq
  %v180 = vshrl.u32 %v179, 7
  %v181 = vsub.s32 1, %v180
  %v182 = vrot.slane %v22, %v181
  %v187 = vunpack.c.l.b16 %v167
  %v188 = vunpack.c.l.b16 %v168
  %v189 = vunpack.c.l.b16 %v169
  %v190 = vunpack.c.l.b16 %v170
  %v191 = vpack.c.b16 %v188, %v187
  %v192 = vpack.c.b16 %v190, %v189
  %vm195 = vcmask 261120
  %v197 = vsel %vm195, 0, 0
  %199 = vmatprep.subr.bf16.mxu0 0
  %200 = vmatpush1.bf16.msra.mxu0 %v191
  %201 = vmatprep.subr.bf16.mxu0 0
  %202 = vmatpush1.bf16.msra.mxu0 %v192
  %203 = vmatprep.subr.bf16.mxu0 0
  %204 = vmatpush1.bf16.msra.mxu0 0
  %205 = vmatprep.subr.bf16.mxu0 0
  %206 = vmatpush1.bf16.msra.mxu0 0
  %207 = vmatprep.subr.bf16.mxu0 0
  %208 = vmatpush1.bf16.msra.mxu0 0
  %209 = vmatprep.subr.bf16.mxu0 0
  %210 = vmatpush1.bf16.msra.mxu0 0
  %211 = vmatprep.subr.bf16.mxu0 0
  %212 = vmatpush1.bf16.msra.mxu0 0
  %213 = vmatprep.subr.bf16.mxu0 0
  %214 = vmatpush1.bf16.msra.mxu0 0
  %215 = vmatprep.subr.bf16.mxu0 0
  %216 = vmatpush1.bf16.msra.mxu0 0
  %217 = vmatprep.subr.bf16.mxu0 0
  %218 = vmatpush1.bf16.msra.mxu0 0
  %219 = vmatprep.subr.bf16.mxu0 0
  %220 = vmatpush1.bf16.msra.mxu0 0
  %221 = vmatprep.subr.bf16.mxu0 0
  %222 = vmatpush1.bf16.msra.mxu0 0
  %223 = vmatprep.subr.bf16.mxu0 0
  %224 = vmatpush1.bf16.msra.mxu0 0
  %225 = vmatprep.subr.bf16.mxu0 0
  %226 = vmatpush1.bf16.msra.mxu0 0
  %227 = vmatprep.subr.bf16.mxu0 0
  %228 = vmatpush1.bf16.msra.mxu0 0
  %229 = vmatprep.subr.bf16.mxu0 0
  %230 = vmatpush1.bf16.msra.mxu0 0
  %231 = vmatprep.mubr.bf16.mxu0 0
  %232 = vmatmul.mubr.bf16.gmra.mrb[0].mxu0 %v197
  %v233 = vpop.f32.mrb[0].mxu0
  %v234 = vadd.f32 0.0, %v233
  %v235 = vpop.f32.mrb[0].mxu0
  %v236 = vpop.f32.mrb[0].mxu0
  %v237 = vpop.f32.mrb[0].mxu0
  %238 = vdwg.mxu0
  %v239 = vadd.f32 %v129, %v234
  %v240 = vmul.f32 %v239, %v20
  %v241 = vxor.u32 %v240, 2147483648
  %v242 = vmul.f32 %v241, 1.442695
  %v243 = vpow.pop %v242
  %v244 = vadd.f32 %v243, 1.0
  %v245 = vrcp.pop %v244
  %v246 = vmul.f32 1.0, %v245
  %v247 = vmul.f32 %v246, %v20
  %v248 = vadd.f32 %v247, %v21
  %v249 = vmul.f32 %v248, 0.0
  %251 = vrot.lane.b32.xlu0 %v248, 64
  %v252 = vpop.permute.xlu0 %251
  %v254 = vmul.f32 %v248, %v252
  %256 = vrot.lane.b32.xlu0 %v254, 32
  %v257 = vpop.permute.xlu0 %256
  %v259 = vadd.f32 %v249, %v257
  %v260 = vtanh.pop %v259
  %262 = vrot.lane.b32.xlu0 %v260, 64
  %v263 = vpop.permute.xlu0 %262
  %v265 = vmul.f32 %v248, %v263
  %267 = vrot.lane.b32.xlu0 %v265, 32
  %v268 = vpop.permute.xlu0 %267
  %v270 = vsel %vm195, %v268, 0.0
  %v271 = vpack.c.bf16 %v270, %v270
  %v280 = vunpack.c.l.b16 %v171
  %v281 = vunpack.c.l.b16 %v172
  %v282 = vunpack.c.l.b16 %v173
  %v283 = vunpack.c.l.b16 %v174
  %v284 = vunpack.c.l.b16 %v175
  %v285 = vunpack.c.l.b16 %v176
  %v286 = vunpack.c.l.b16 %v177
  %v287 = vunpack.c.l.b16 %v178
  %v288 = vpack.c.b16 %v281, %v280
  %v289 = vpack.c.b16 %v283, %v282
  %v290 = vpack.c.b16 %v285, %v284
  %v291 = vpack.c.b16 %v287, %v286
  %vm296 = vcmask 523264
  %v298 = vsel %vm296, %v271, 0
  %300 = vmatprep.subr.bf16.mxu0 0
  %301 = vmatpush1.bf16.msra.mxu0 %v288
  %302 = vmatprep.subr.bf16.mxu0 0
  %303 = vmatpush1.bf16.msra.mxu0 %v289
  %304 = vmatprep.subr.bf16.mxu0 0
  %305 = vmatpush1.bf16.msra.mxu0 %v290
  %306 = vmatprep.subr.bf16.mxu0 0
  %307 = vmatpush1.bf16.msra.mxu0 %v291
  %308 = vmatprep.subr.bf16.mxu0 0
  %309 = vmatpush1.bf16.msra.mxu0 0
  %310 = vmatprep.subr.bf16.mxu0 0
  %311 = vmatpush1.bf16.msra.mxu0 0
  %312 = vmatprep.subr.bf16.mxu0 0
  %313 = vmatpush1.bf16.msra.mxu0 0
  %314 = vmatprep.subr.bf16.mxu0 0
  %315 = vmatpush1.bf16.msra.mxu0 0
  %316 = vmatprep.subr.bf16.mxu0 0
  %317 = vmatpush1.bf16.msra.mxu0 0
  %318 = vmatprep.subr.bf16.mxu0 0
  %319 = vmatpush1.bf16.msra.mxu0 0
  %320 = vmatprep.subr.bf16.mxu0 0
  %321 = vmatpush1.bf16.msra.mxu0 0
  %322 = vmatprep.subr.bf16.mxu0 0
  %323 = vmatpush1.bf16.msra.mxu0 0
  %324 = vmatprep.subr.bf16.mxu0 0
  %325 = vmatpush1.bf16.msra.mxu0 0
  %326 = vmatprep.subr.bf16.mxu0 0
  %327 = vmatpush1.bf16.msra.mxu0 0
  %328 = vmatprep.subr.bf16.mxu0 0
  %329 = vmatpush1.bf16.msra.mxu0 0
  %330 = vmatprep.subr.bf16.mxu0 0
  %331 = vmatpush1.bf16.msra.mxu0 0
  %332 = vmatprep.mubr.bf16.mxu0 0
  %333 = vmatmul.mubr.bf16.gmra.mrb[0].mxu0 %v298
  %v334 = vpop.f32.mrb[0].mxu0
  %v335 = vadd.f32 %v182, %v334
  %v336 = vpop.f32.mrb[0].mxu0
  %v337 = vpop.f32.mrb[0].mxu0
  %v338 = vpop.f32.mrb[0].mxu0
  %339 = vdwg.mxu0
  %v340 = vmul.f32 %v335, %v20
  %v341 = vxor.u32 %v340, 2147483648
  %v342 = vmul.f32 %v341, 1.442695
  %v343 = vpow.pop %v342
  %v344 = vadd.f32 %v343, 1.0
  %v345 = vrcp.pop %v344
  %v346 = vmul.f32 1.0, %v345
  %v347 = vmul.f32 %v346, %v20
  %v348 = vadd.f32 %v347, %v21
  %v349 = vmul.f32 %v348, 0.0
  %351 = vrot.lane.b32.xlu0 %v348, 64
  %v352 = vpop.permute.xlu0 %351
  %v354 = vmul.f32 %v348, %v352
  %356 = vrot.lane.b32.xlu0 %v354, 32
  %v357 = vpop.permute.xlu0 %356
  %v359 = vadd.f32 %v349, %v357
  %v360 = vtanh.pop %v359
  %362 = vrot.lane.b32.xlu0 %v360, 64
  %v363 = vpop.permute.xlu0 %362
  %v365 = vmul.f32 %v348, %v363
  %v366 = vpack.c.bf16 %v265, %v265
  %368 = vrot.lane.b32.xlu0 %v366, 32
  %v369 = vpop.permute.xlu0 %368
  %v371 = vsel %vm195, %v369, 0
  %373 = vmatprep.subr.bf16.mxu0 0
  %374 = vmatpush1.bf16.msra.mxu0 %v191
  %375 = vmatprep.subr.bf16.mxu0 0
  %376 = vmatpush1.bf16.msra.mxu0 %v192
  %377 = vmatprep.subr.bf16.mxu0 0
  %378 = vmatpush1.bf16.msra.mxu0 0
  %379 = vmatprep.subr.bf16.mxu0 0
  %380 = vmatpush1.bf16.msra.mxu0 0
  %381 = vmatprep.subr.bf16.mxu0 0
  %382 = vmatpush1.bf16.msra.mxu0 0
  %383 = vmatprep.subr.bf16.mxu0 0
  %384 = vmatpush1.bf16.msra.mxu0 0
  %385 = vmatprep.subr.bf16.mxu0 0
  %386 = vmatpush1.bf16.msra.mxu0 0
  %387 = vmatprep.subr.bf16.mxu0 0
  %388 = vmatpush1.bf16.msra.mxu0 0
  %389 = vmatprep.subr.bf16.mxu0 0
  %390 = vmatpush1.bf16.msra.mxu0 0
  %391 = vmatprep.subr.bf16.mxu0 0
  %392 = vmatpush1.bf16.msra.mxu0 0
  %393 = vmatprep.subr.bf16.mxu0 0
  %394 = vmatpush1.bf16.msra.mxu0 0
  %395 = vmatprep.subr.bf16.mxu0 0
  %396 = vmatpush1.bf16.msra.mxu0 0
  %397 = vmatprep.subr.bf16.mxu0 0
  %398 = vmatpush1.bf16.msra.mxu0 0
  %399 = vmatprep.subr.bf16.mxu0 0
  %400 = vmatpush1.bf16.msra.mxu0 0
  %401 = vmatprep.subr.bf16.mxu0 0
  %402 = vmatpush1.bf16.msra.mxu0 0
  %403 = vmatprep.subr.bf16.mxu0 0
  %404 = vmatpush1.bf16.msra.mxu0 0
  %405 = vmatprep.mubr.bf16.mxu0 0
  %406 = vmatmul.mubr.bf16.gmra.mrb[0].mxu0 %v371
  %v407 = vpop.f32.mrb[0].mxu0
  %v408 = vadd.f32 0.0, %v407
  %v409 = vpop.f32.mrb[0].mxu0
  %v410 = vpop.f32.mrb[0].mxu0
  %v411 = vpop.f32.mrb[0].mxu0
  %412 = vdwg.mxu0
  %v413 = vadd.f32 %v134, %v408
  %v414 = vmul.f32 %v413, %v20
  %v415 = vxor.u32 %v414, 2147483648
  %v416 = vmul.f32 %v415, 1.442695
  %v417 = vpow.pop %v416
  %v418 = vadd.f32 %v417, 1.0
  %v419 = vrcp.pop %v418
  %v420 = vmul.f32 1.0, %v419
  %v421 = vmul.f32 %v420, %v20
  %v422 = vadd.f32 %v421, %v21
  %v423 = vmul.f32 %v422, %v259
  %425 = vrot.lane.b32.xlu0 %v422, 64
  %v426 = vpop.permute.xlu0 %425
  %v428 = vmul.f32 %v422, %v426
  %430 = vrot.lane.b32.xlu0 %v428, 32
  %v431 = vpop.permute.xlu0 %430
  %v433 = vadd.f32 %v423, %v431
  %v434 = vtanh.pop %v433
  %436 = vrot.lane.b32.xlu0 %v434, 64
  %v437 = vpop.permute.xlu0 %436
  %v439 = vmul.f32 %v422, %v437
  %441 = vrot.lane.b32.xlu0 %v439, 32
  %v442 = vpop.permute.xlu0 %441
  %445 = vrot.lane.b32.xlu0 %v365, 64
  %v446 = vpop.permute.xlu0 %445
  %v448 = vsel %vm195, %v442, %v446
  %v449 = vpack.c.bf16 %v448, %v448
  %v451 = vsel %vm296, %v449, 0
  %453 = vmatprep.subr.bf16.mxu0 0
  %454 = vmatpush1.bf16.msra.mxu0 %v288
  %455 = vmatprep.subr.bf16.mxu0 0
  %456 = vmatpush1.bf16.msra.mxu0 %v289
  %457 = vmatprep.subr.bf16.mxu0 0
  %458 = vmatpush1.bf16.msra.mxu0 %v290
  %459 = vmatprep.subr.bf16.mxu0 0
  %460 = vmatpush1.bf16.msra.mxu0 %v291
  %461 = vmatprep.subr.bf16.mxu0 0
  %462 = vmatpush1.bf16.msra.mxu0 0
  %463 = vmatprep.subr.bf16.mxu0 0
  %464 = vmatpush1.bf16.msra.mxu0 0
  %465 = vmatprep.subr.bf16.mxu0 0
  %466 = vmatpush1.bf16.msra.mxu0 0
  %467 = vmatprep.subr.bf16.mxu0 0
  %468 = vmatpush1.bf16.msra.mxu0 0
  %469 = vmatprep.subr.bf16.mxu0 0
  %470 = vmatpush1.bf16.msra.mxu0 0
  %471 = vmatprep.subr.bf16.mxu0 0
  %472 = vmatpush1.bf16.msra.mxu0 0
  %473 = vmatprep.subr.bf16.mxu0 0
  %474 = vmatpush1.bf16.msra.mxu0 0
  %475 = vmatprep.subr.bf16.mxu0 0
  %476 = vmatpush1.bf16.msra.mxu0 0
  %477 = vmatprep.subr.bf16.mxu0 0
  %478 = vmatpush1.bf16.msra.mxu0 0
  %479 = vmatprep.subr.bf16.mxu0 0
  %480 = vmatpush1.bf16.msra.mxu0 0
  %481 = vmatprep.subr.bf16.mxu0 0
  %482 = vmatpush1.bf16.msra.mxu0 0
  %483 = vmatprep.subr.bf16.mxu0 0
  %484 = vmatpush1.bf16.msra.mxu0 0
  %485 = vmatprep.mubr.bf16.mxu0 0
  %486 = vmatmul.mubr.bf16.gmra.mrb[0].mxu0 %v451
  %v487 = vpop.f32.mrb[0].mxu0
  %v488 = vadd.f32 %v182, %v487
  %v489 = vpop.f32.mrb[0].mxu0
  %v490 = vpop.f32.mrb[0].mxu0
  %v491 = vpop.f32.mrb[0].mxu0
  %492 = vdwg.mxu0
  %v493 = vmul.f32 %v488, %v20
  %v494 = vxor.u32 %v493, 2147483648
  %v495 = vmul.f32 %v494, 1.442695
  %v496 = vpow.pop %v495
  %v497 = vadd.f32 %v496, 1.0
  %v498 = vrcp.pop %v497
  %v499 = vmul.f32 1.0, %v498
  %v500 = vmul.f32 %v499, %v20
  %v501 = vadd.f32 %v500, %v21
  %v502 = vmul.f32 %v501, %v359
  %504 = vrot.lane.b32.xlu0 %v501, 64
  %v505 = vpop.permute.xlu0 %504
  %v507 = vmul.f32 %v501, %v505
  %509 = vrot.lane.b32.xlu0 %v507, 32
  %v510 = vpop.permute.xlu0 %509
  %v512 = vadd.f32 %v502, %v510
  %v513 = vtanh.pop %v512
  %515 = vrot.lane.b32.xlu0 %v513, 64
  %v516 = vpop.permute.xlu0 %515
  %v518 = vmul.f32 %v501, %v516
  %v519 = vpack.c.bf16 %v439, %v439
  %521 = vrot.lane.b32.xlu0 %v519, 32
  %v522 = vpop.permute.xlu0 %521
  %v524 = vsel %vm195, %v522, 0
  %526 = vmatprep.subr.bf16.mxu0 0
  %527 = vmatpush1.bf16.msra.mxu0 %v191
  %528 = vmatprep.subr.bf16.mxu0 0
  %529 = vmatpush1.bf16.msra.mxu0 %v192
  %530 = vmatprep.subr.bf16.mxu0 0
  %531 = vmatpush1.bf16.msra.mxu0 0
  %532 = vmatprep.subr.bf16.mxu0 0
  %533 = vmatpush1.bf16.msra.mxu0 0
  %534 = vmatprep.subr.bf16.mxu0 0
  %535 = vmatpush1.bf16.msra.mxu0 0
  %536 = vmatprep.subr.bf16.mxu0 0
  %537 = vmatpush1.bf16.msra.mxu0 0
  %538 = vmatprep.subr.bf16.mxu0 0
  %539 = vmatpush1.bf16.msra.mxu0 0
  %540 = vmatprep.subr.bf16.mxu0 0
  %541 = vmatpush1.bf16.msra.mxu0 0
  %542 = vmatprep.subr.bf16.mxu0 0
  %543 = vmatpush1.bf16.msra.mxu0 0
  %544 = vmatprep.subr.bf16.mxu0 0
  %545 = vmatpush1.bf16.msra.mxu0 0
  %546 = vmatprep.subr.bf16.mxu0 0
  %547 = vmatpush1.bf16.msra.mxu0 0
  %548 = vmatprep.subr.bf16.mxu0 0
  %549 = vmatpush1.bf16.msra.mxu0 0
  %550 = vmatprep.subr.bf16.mxu0 0
  %551 = vmatpush1.bf16.msra.mxu0 0
  %552 = vmatprep.subr.bf16.mxu0 0
  %553 = vmatpush1.bf16.msra.mxu0 0
  %554 = vmatprep.subr.bf16.mxu0 0
  %555 = vmatpush1.bf16.msra.mxu0 0
  %556 = vmatprep.subr.bf16.mxu0 0
  %557 = vmatpush1.bf16.msra.mxu0 0
  %558 = vmatprep.mubr.bf16.mxu0 0
  %559 = vmatmul.mubr.bf16.gmra.mrb[0].mxu0 %v524
  %v560 = vpop.f32.mrb[0].mxu0
  %v561 = vadd.f32 0.0, %v560
  %v562 = vpop.f32.mrb[0].mxu0
  %v563 = vpop.f32.mrb[0].mxu0
  %v564 = vpop.f32.mrb[0].mxu0
  %565 = vdwg.mxu0
  %v566 = vadd.f32 %v139, %v561
  %v567 = vmul.f32 %v566, %v20
  %v568 = vxor.u32 %v567, 2147483648
  %v569 = vmul.f32 %v568, 1.442695
  %v570 = vpow.pop %v569
  %v571 = vadd.f32 %v570, 1.0
  %v572 = vrcp.pop %v571
  %v573 = vmul.f32 1.0, %v572
  %v574 = vmul.f32 %v573, %v20
  %v575 = vadd.f32 %v574, %v21
  %v576 = vmul.f32 %v575, %v433
  %578 = vrot.lane.b32.xlu0 %v575, 64
  %v579 = vpop.permute.xlu0 %578
  %v581 = vmul.f32 %v575, %v579
  %583 = vrot.lane.b32.xlu0 %v581, 32
  %v584 = vpop.permute.xlu0 %583
  %v586 = vadd.f32 %v576, %v584
  %v587 = vtanh.pop %v586
  %589 = vrot.lane.b32.xlu0 %v587, 64
  %v590 = vpop.permute.xlu0 %589
  %v592 = vmul.f32 %v575, %v590
  %594 = vrot.lane.b32.xlu0 %v592, 32
  %v595 = vpop.permute.xlu0 %594
  %598 = vrot.lane.b32.xlu0 %v518, 64
  %v599 = vpop.permute.xlu0 %598
  %v601 = vsel %vm195, %v595, %v599
  %v602 = vpack.c.bf16 %v601, %v601
  %v604 = vsel %vm296, %v602, 0
  %606 = vmatprep.subr.bf16.mxu0 0
  %607 = vmatpush1.bf16.msra.mxu0 %v288
  %608 = vmatprep.subr.bf16.mxu0 0
  %609 = vmatpush1.bf16.msra.mxu0 %v289
  %610 = vmatprep.subr.bf16.mxu0 0
  %611 = vmatpush1.bf16.msra.mxu0 %v290
  %612 = vmatprep.subr.bf16.mxu0 0
  %613 = vmatpush1.bf16.msra.mxu0 %v291
  %614 = vmatprep.subr.bf16.mxu0 0
  %615 = vmatpush1.bf16.msra.mxu0 0
  %616 = vmatprep.subr.bf16.mxu0 0
  %617 = vmatpush1.bf16.msra.mxu0 0
  %618 = vmatprep.subr.bf16.mxu0 0
  %619 = vmatpush1.bf16.msra.mxu0 0
  %620 = vmatprep.subr.bf16.mxu0 0
  %621 = vmatpush1.bf16.msra.mxu0 0
  %622 = vmatprep.subr.bf16.mxu0 0
  %623 = vmatpush1.bf16.msra.mxu0 0
  %624 = vmatprep.subr.bf16.mxu0 0
  %625 = vmatpush1.bf16.msra.mxu0 0
  %626 = vmatprep.subr.bf16.mxu0 0
  %627 = vmatpush1.bf16.msra.mxu0 0
  %628 = vmatprep.subr.bf16.mxu0 0
  %629 = vmatpush1.bf16.msra.mxu0 0
  %630 = vmatprep.subr.bf16.mxu0 0
  %631 = vmatpush1.bf16.msra.mxu0 0
  %632 = vmatprep.subr.bf16.mxu0 0
  %633 = vmatpush1.bf16.msra.mxu0 0
  %634 = vmatprep.subr.bf16.mxu0 0
  %635 = vmatpush1.bf16.msra.mxu0 0
  %636 = vmatprep.subr.bf16.mxu0 0
  %637 = vmatpush1.bf16.msra.mxu0 0
  %638 = vmatprep.mubr.bf16.mxu0 0
  %639 = vmatmul.mubr.bf16.gmra.mrb[0].mxu0 %v604
  %v640 = vpop.f32.mrb[0].mxu0
  %v641 = vadd.f32 %v182, %v640
  %v642 = vpop.f32.mrb[0].mxu0
  %v643 = vpop.f32.mrb[0].mxu0
  %v644 = vpop.f32.mrb[0].mxu0
  %645 = vdwg.mxu0
  %v646 = vmul.f32 %v641, %v20
  %v647 = vxor.u32 %v646, 2147483648
  %v648 = vmul.f32 %v647, 1.442695
  %v649 = vpow.pop %v648
  %v650 = vadd.f32 %v649, 1.0
  %v651 = vrcp.pop %v650
  %v652 = vmul.f32 1.0, %v651
  %v653 = vmul.f32 %v652, %v20
  %v654 = vadd.f32 %v653, %v21
  %v655 = vmul.f32 %v654, %v512
  %657 = vrot.lane.b32.xlu0 %v654, 64
  %v658 = vpop.permute.xlu0 %657
  %v660 = vmul.f32 %v654, %v658
  %662 = vrot.lane.b32.xlu0 %v660, 32
  %v663 = vpop.permute.xlu0 %662
  %v665 = vadd.f32 %v655, %v663
  %v666 = vtanh.pop %v665
  %668 = vrot.lane.b32.xlu0 %v666, 64
  %v669 = vpop.permute.xlu0 %668
  %v671 = vmul.f32 %v654, %v669
  %v672 = vpack.c.bf16 %v592, %v592
  %674 = vrot.lane.b32.xlu0 %v672, 32
  %v675 = vpop.permute.xlu0 %674
  %v677 = vsel %vm195, %v675, 0
  %679 = vmatprep.subr.bf16.mxu0 0
  %680 = vmatpush1.bf16.msra.mxu0 %v191
  %681 = vmatprep.subr.bf16.mxu0 0
  %682 = vmatpush1.bf16.msra.mxu0 %v192
  %683 = vmatprep.subr.bf16.mxu0 0
  %684 = vmatpush1.bf16.msra.mxu0 0
  %685 = vmatprep.subr.bf16.mxu0 0
  %686 = vmatpush1.bf16.msra.mxu0 0
  %687 = vmatprep.subr.bf16.mxu0 0
  %688 = vmatpush1.bf16.msra.mxu0 0
  %689 = vmatprep.subr.bf16.mxu0 0
  %690 = vmatpush1.bf16.msra.mxu0 0
  %691 = vmatprep.subr.bf16.mxu0 0
  %692 = vmatpush1.bf16.msra.mxu0 0
  %693 = vmatprep.subr.bf16.mxu0 0
  %694 = vmatpush1.bf16.msra.mxu0 0
  %695 = vmatprep.subr.bf16.mxu0 0
  %696 = vmatpush1.bf16.msra.mxu0 0
  %697 = vmatprep.subr.bf16.mxu0 0
  %698 = vmatpush1.bf16.msra.mxu0 0
  %699 = vmatprep.subr.bf16.mxu0 0
  %700 = vmatpush1.bf16.msra.mxu0 0
  %701 = vmatprep.subr.bf16.mxu0 0
  %702 = vmatpush1.bf16.msra.mxu0 0
  %703 = vmatprep.subr.bf16.mxu0 0
  %704 = vmatpush1.bf16.msra.mxu0 0
  %705 = vmatprep.subr.bf16.mxu0 0
  %706 = vmatpush1.bf16.msra.mxu0 0
  %707 = vmatprep.subr.bf16.mxu0 0
  %708 = vmatpush1.bf16.msra.mxu0 0
  %709 = vmatprep.subr.bf16.mxu0 0
  %710 = vmatpush1.bf16.msra.mxu0 0
  %711 = vmatprep.mubr.bf16.mxu0 0
  %712 = vmatmul.mubr.bf16.gmra.mrb[0].mxu0 %v677
  %v713 = vpop.f32.mrb[0].mxu0
  %v714 = vadd.f32 0.0, %v713
  %v715 = vpop.f32.mrb[0].mxu0
  %v716 = vpop.f32.mrb[0].mxu0
  %v717 = vpop.f32.mrb[0].mxu0
  %718 = vdwg.mxu0
  %v719 = vadd.f32 %v144, %v714
  %v720 = vmul.f32 %v719, %v20
  %v721 = vxor.u32 %v720, 2147483648
  %v722 = vmul.f32 %v721, 1.442695
  %v723 = vpow.pop %v722
  %v724 = vadd.f32 %v723, 1.0
  %v725 = vrcp.pop %v724
  %v726 = vmul.f32 1.0, %v725
  %v727 = vmul.f32 %v726, %v20
  %v728 = vadd.f32 %v727, %v21
  %v729 = vmul.f32 %v728, %v586
  %731 = vrot.lane.b32.xlu0 %v728, 64
  %v732 = vpop.permute.xlu0 %731
  %v734 = vmul.f32 %v728, %v732
  %736 = vrot.lane.b32.xlu0 %v734, 32
  %v737 = vpop.permute.xlu0 %736
  %v739 = vadd.f32 %v729, %v737
  %v740 = vtanh.pop %v739
  %742 = vrot.lane.b32.xlu0 %v740, 64
  %v743 = vpop.permute.xlu0 %742
  %v745 = vmul.f32 %v728, %v743
  %747 = vrot.lane.b32.xlu0 %v745, 32
  %v748 = vpop.permute.xlu0 %747
  %751 = vrot.lane.b32.xlu0 %v671, 64
  %v752 = vpop.permute.xlu0 %751
  %v754 = vsel %vm195, %v748, %v752
  %v755 = vpack.c.bf16 %v754, %v754
  %v757 = vsel %vm296, %v755, 0
  %759 = vmatprep.subr.bf16.mxu0 0
  %760 = vmatpush1.bf16.msra.mxu0 %v288
  %761 = vmatprep.subr.bf16.mxu0 0
  %762 = vmatpush1.bf16.msra.mxu0 %v289
  %763 = vmatprep.subr.bf16.mxu0 0
  %764 = vmatpush1.bf16.msra.mxu0 %v290
  %765 = vmatprep.subr.bf16.mxu0 0
  %766 = vmatpush1.bf16.msra.mxu0 %v291
  %767 = vmatprep.subr.bf16.mxu0 0
  %768 = vmatpush1.bf16.msra.mxu0 0
  %769 = vmatprep.subr.bf16.mxu0 0
  %770 = vmatpush1.bf16.msra.mxu0 0
  %771 = vmatprep.subr.bf16.mxu0 0
  %772 = vmatpush1.bf16.msra.mxu0 0
  %773 = vmatprep.subr.bf16.mxu0 0
  %774 = vmatpush1.bf16.msra.mxu0 0
  %775 = vmatprep.subr.bf16.mxu0 0
  %776 = vmatpush1.bf16.msra.mxu0 0
  %777 = vmatprep.subr.bf16.mxu0 0
  %778 = vmatpush1.bf16.msra.mxu0 0
  %779 = vmatprep.subr.bf16.mxu0 0
  %780 = vmatpush1.bf16.msra.mxu0 0
  %781 = vmatprep.subr.bf16.mxu0 0
  %782 = vmatpush1.bf16.msra.mxu0 0
  %783 = vmatprep.subr.bf16.mxu0 0
  %784 = vmatpush1.bf16.msra.mxu0 0
  %785 = vmatprep.subr.bf16.mxu0 0
  %786 = vmatpush1.bf16.msra.mxu0 0
  %787 = vmatprep.subr.bf16.mxu0 0
  %788 = vmatpush1.bf16.msra.mxu0 0
  %789 = vmatprep.subr.bf16.mxu0 0
  %790 = vmatpush1.bf16.msra.mxu0 0
  %791 = vmatprep.mubr.bf16.mxu0 0
  %792 = vmatmul.mubr.bf16.gmra.mrb[0].mxu0 %v757
  %v793 = vpop.f32.mrb[0].mxu0
  %v794 = vadd.f32 %v182, %v793
  %v795 = vpop.f32.mrb[0].mxu0
  %v796 = vpop.f32.mrb[0].mxu0
  %v797 = vpop.f32.mrb[0].mxu0
  %798 = vdwg.mxu0
  %v799 = vmul.f32 %v794, %v20
  %v800 = vxor.u32 %v799, 2147483648
  %v801 = vmul.f32 %v800, 1.442695
  %v802 = vpow.pop %v801
  %v803 = vadd.f32 %v802, 1.0
  %v804 = vrcp.pop %v803
  %v805 = vmul.f32 1.0, %v804
  %v806 = vmul.f32 %v805, %v20
  %v807 = vadd.f32 %v806, %v21
  %v808 = vmul.f32 %v807, %v665
  %810 = vrot.lane.b32.xlu0 %v807, 64
  %v811 = vpop.permute.xlu0 %810
  %v813 = vmul.f32 %v807, %v811
  %815 = vrot.lane.b32.xlu0 %v813, 32
  %v816 = vpop.permute.xlu0 %815
  %v818 = vadd.f32 %v808, %v816
  %v819 = vtanh.pop %v818
  %821 = vrot.lane.b32.xlu0 %v819, 64
  %v822 = vpop.permute.xlu0 %821
  %v824 = vmul.f32 %v807, %v822
  %v825 = vpack.c.bf16 %v745, %v745
  %827 = vrot.lane.b32.xlu0 %v825, 32
  %v828 = vpop.permute.xlu0 %827
  %v830 = vsel %vm195, %v828, 0
  %832 = vmatprep.subr.bf16.mxu0 0
  %833 = vmatpush1.bf16.msra.mxu0 %v191
  %834 = vmatprep.subr.bf16.mxu0 0
  %835 = vmatpush1.bf16.msra.mxu0 %v192
  %836 = vmatprep.subr.bf16.mxu0 0
  %837 = vmatpush1.bf16.msra.mxu0 0
  %838 = vmatprep.subr.bf16.mxu0 0
  %839 = vmatpush1.bf16.msra.mxu0 0
  %840 = vmatprep.subr.bf16.mxu0 0
  %841 = vmatpush1.bf16.msra.mxu0 0
  %842 = vmatprep.subr.bf16.mxu0 0
  %843 = vmatpush1.bf16.msra.mxu0 0
  %844 = vmatprep.subr.bf16.mxu0 0
  %845 = vmatpush1.bf16.msra.mxu0 0
  %846 = vmatprep.subr.bf16.mxu0 0
  %847 = vmatpush1.bf16.msra.mxu0 0
  %848 = vmatprep.subr.bf16.mxu0 0
  %849 = vmatpush1.bf16.msra.mxu0 0
  %850 = vmatprep.subr.bf16.mxu0 0
  %851 = vmatpush1.bf16.msra.mxu0 0
  %852 = vmatprep.subr.bf16.mxu0 0
  %853 = vmatpush1.bf16.msra.mxu0 0
  %854 = vmatprep.subr.bf16.mxu0 0
  %855 = vmatpush1.bf16.msra.mxu0 0
  %856 = vmatprep.subr.bf16.mxu0 0
  %857 = vmatpush1.bf16.msra.mxu0 0
  %858 = vmatprep.subr.bf16.mxu0 0
  %859 = vmatpush1.bf16.msra.mxu0 0
  %860 = vmatprep.subr.bf16.mxu0 0
  %861 = vmatpush1.bf16.msra.mxu0 0
  %862 = vmatprep.subr.bf16.mxu0 0
  %863 = vmatpush1.bf16.msra.mxu0 0
  %864 = vmatprep.mubr.bf16.mxu0 0
  %865 = vmatmul.mubr.bf16.gmra.mrb[0].mxu0 %v830
  %v866 = vpop.f32.mrb[0].mxu0
  %v867 = vadd.f32 0.0, %v866
  %v868 = vpop.f32.mrb[0].mxu0
  %v869 = vpop.f32.mrb[0].mxu0
  %v870 = vpop.f32.mrb[0].mxu0
  %871 = vdwg.mxu0
  %v872 = vadd.f32 %v149, %v867
  %v873 = vmul.f32 %v872, %v20
  %v874 = vxor.u32 %v873, 2147483648
  %v875 = vmul.f32 %v874, 1.442695
  %v876 = vpow.pop %v875
  %v877 = vadd.f32 %v876, 1.0
  %v878 = vrcp.pop %v877
  %v879 = vmul.f32 1.0, %v878
  %v880 = vmul.f32 %v879, %v20
  %v881 = vadd.f32 %v880, %v21
  %v882 = vmul.f32 %v881, %v739
  %884 = vrot.lane.b32.xlu0 %v881, 64
  %v885 = vpop.permute.xlu0 %884
  %v887 = vmul.f32 %v881, %v885
  %889 = vrot.lane.b32.xlu0 %v887, 32
  %v890 = vpop.permute.xlu0 %889
  %v892 = vadd.f32 %v882, %v890
  %v893 = vtanh.pop %v892
  %895 = vrot.lane.b32.xlu0 %v893, 64
  %v896 = vpop.permute.xlu0 %895
  %v898 = vmul.f32 %v881, %v896
  %900 = vrot.lane.b32.xlu0 %v898, 32
  %v901 = vpop.permute.xlu0 %900
  %904 = vrot.lane.b32.xlu0 %v824, 64
  %v905 = vpop.permute.xlu0 %904
  %v907 = vsel %vm195, %v901, %v905
  %v908 = vpack.c.bf16 %v907, %v907
  %v910 = vsel %vm296, %v908, 0
  %912 = vmatprep.subr.bf16.mxu0 0
  %913 = vmatpush1.bf16.msra.mxu0 %v288
  %914 = vmatprep.subr.bf16.mxu0 0
  %915 = vmatpush1.bf16.msra.mxu0 %v289
  %916 = vmatprep.subr.bf16.mxu0 0
  %917 = vmatpush1.bf16.msra.mxu0 %v290
  %918 = vmatprep.subr.bf16.mxu0 0
  %919 = vmatpush1.bf16.msra.mxu0 %v291
  %920 = vmatprep.subr.bf16.mxu0 0
  %921 = vmatpush1.bf16.msra.mxu0 0
  %922 = vmatprep.subr.bf16.mxu0 0
  %923 = vmatpush1.bf16.msra.mxu0 0
  %924 = vmatprep.subr.bf16.mxu0 0
  %925 = vmatpush1.bf16.msra.mxu0 0
  %926 = vmatprep.subr.bf16.mxu0 0
  %927 = vmatpush1.bf16.msra.mxu0 0
  %928 = vmatprep.subr.bf16.mxu0 0
  %929 = vmatpush1.bf16.msra.mxu0 0
  %930 = vmatprep.subr.bf16.mxu0 0
  %931 = vmatpush1.bf16.msra.mxu0 0
  %932 = vmatprep.subr.bf16.mxu0 0
  %933 = vmatpush1.bf16.msra.mxu0 0
  %934 = vmatprep.subr.bf16.mxu0 0
  %935 = vmatpush1.bf16.msra.mxu0 0
  %936 = vmatprep.subr.bf16.mxu0 0
  %937 = vmatpush1.bf16.msra.mxu0 0
  %938 = vmatprep.subr.bf16.mxu0 0
  %939 = vmatpush1.bf16.msra.mxu0 0
  %940 = vmatprep.subr.bf16.mxu0 0
  %941 = vmatpush1.bf16.msra.mxu0 0
  %942 = vmatprep.subr.bf16.mxu0 0
  %943 = vmatpush1.bf16.msra.mxu0 0
  %944 = vmatprep.mubr.bf16.mxu0 0
  %945 = vmatmul.mubr.bf16.gmra.mrb[0].mxu0 %v910
  %v946 = vpop.f32.mrb[0].mxu0
  %v947 = vadd.f32 %v182, %v946
  %v948 = vpop.f32.mrb[0].mxu0
  %v949 = vpop.f32.mrb[0].mxu0
  %v950 = vpop.f32.mrb[0].mxu0
  %951 = vdwg.mxu0
  %v952 = vmul.f32 %v947, %v20
  %v953 = vxor.u32 %v952, 2147483648
  %v954 = vmul.f32 %v953, 1.442695
  %v955 = vpow.pop %v954
  %v956 = vadd.f32 %v955, 1.0
  %v957 = vrcp.pop %v956
  %v958 = vmul.f32 1.0, %v957
  %v959 = vmul.f32 %v958, %v20
  %v960 = vadd.f32 %v959, %v21
  %v961 = vmul.f32 %v960, %v818
  %963 = vrot.lane.b32.xlu0 %v960, 64
  %v964 = vpop.permute.xlu0 %963
  %v966 = vmul.f32 %v960, %v964
  %968 = vrot.lane.b32.xlu0 %v966, 32
  %v969 = vpop.permute.xlu0 %968
  %v971 = vadd.f32 %v961, %v969
  %v972 = vtanh.pop %v971
  %974 = vrot.lane.b32.xlu0 %v972, 64
  %v975 = vpop.permute.xlu0 %974
  %v977 = vmul.f32 %v960, %v975
  %v978 = vpack.c.bf16 %v898, %v898
  %980 = vrot.lane.b32.xlu0 %v978, 32
  %v981 = vpop.permute.xlu0 %980
  %v983 = vsel %vm195, %v981, 0
  %985 = vmatprep.subr.bf16.mxu0 0
  %986 = vmatpush1.bf16.msra.mxu0 %v191
  %987 = vmatprep.subr.bf16.mxu0 0
  %988 = vmatpush1.bf16.msra.mxu0 %v192
  %989 = vmatprep.subr.bf16.mxu0 0
  %990 = vmatpush1.bf16.msra.mxu0 0
  %991 = vmatprep.subr.bf16.mxu0 0
  %992 = vmatpush1.bf16.msra.mxu0 0
  %993 = vmatprep.subr.bf16.mxu0 0
  %994 = vmatpush1.bf16.msra.mxu0 0
  %995 = vmatprep.subr.bf16.mxu0 0
  %996 = vmatpush1.bf16.msra.mxu0 0
  %997 = vmatprep.subr.bf16.mxu0 0
  %998 = vmatpush1.bf16.msra.mxu0 0
  %999 = vmatprep.subr.bf16.mxu0 0
  %1000 = vmatpush1.bf16.msra.mxu0 0
  %1001 = vmatprep.subr.bf16.mxu0 0
  %1002 = vmatpush1.bf16.msra.mxu0 0
  %1003 = vmatprep.subr.bf16.mxu0 0
  %1004 = vmatpush1.bf16.msra.mxu0 0
  %1005 = vmatprep.subr.bf16.mxu0 0
  %1006 = vmatpush1.bf16.msra.mxu0 0
  %1007 = vmatprep.subr.bf16.mxu0 0
  %1008 = vmatpush1.bf16.msra.mxu0 0
  %1009 = vmatprep.subr.bf16.mxu0 0
  %1010 = vmatpush1.bf16.msra.mxu0 0
  %1011 = vmatprep.subr.bf16.mxu0 0
  %1012 = vmatpush1.bf16.msra.mxu0 0
  %1013 = vmatprep.subr.bf16.mxu0 0
  %1014 = vmatpush1.bf16.msra.mxu0 0
  %1015 = vmatprep.subr.bf16.mxu0 0
  %1016 = vmatpush1.bf16.msra.mxu0 0
  %1017 = vmatprep.mubr.bf16.mxu0 0
  %1018 = vmatmul.mubr.bf16.gmra.mrb[0].mxu0 %v983
  %v1019 = vpop.f32.mrb[0].mxu0
  %v1020 = vadd.f32 0.0, %v1019
  %v1021 = vpop.f32.mrb[0].mxu0
  %v1022 = vpop.f32.mrb[0].mxu0
  %v1023 = vpop.f32.mrb[0].mxu0
  %1024 = vdwg.mxu0
  %v1025 = vadd.f32 %v154, %v1020
  %v1026 = vmul.f32 %v1025, %v20
  %v1027 = vxor.u32 %v1026, 2147483648
  %v1028 = vmul.f32 %v1027, 1.442695
  %v1029 = vpow.pop %v1028
  %v1030 = vadd.f32 %v1029, 1.0
  %v1031 = vrcp.pop %v1030
  %v1032 = vmul.f32 1.0, %v1031
  %v1033 = vmul.f32 %v1032, %v20
  %v1034 = vadd.f32 %v1033, %v21
  %v1035 = vmul.f32 %v1034, %v892
  %1037 = vrot.lane.b32.xlu0 %v1034, 64
  %v1038 = vpop.permute.xlu0 %1037
  %v1040 = vmul.f32 %v1034, %v1038
  %1042 = vrot.lane.b32.xlu0 %v1040, 32
  %v1043 = vpop.permute.xlu0 %1042
  %v1045 = vadd.f32 %v1035, %v1043
  %v1046 = vtanh.pop %v1045
  %1048 = vrot.lane.b32.xlu0 %v1046, 64
  %v1049 = vpop.permute.xlu0 %1048
  %v1051 = vmul.f32 %v1034, %v1049
  %1053 = vrot.lane.b32.xlu0 %v1051, 32
  %v1054 = vpop.permute.xlu0 %1053
  %1057 = vrot.lane.b32.xlu0 %v977, 64
  %v1058 = vpop.permute.xlu0 %1057
  %v1060 = vsel %vm195, %v1054, %v1058
  %v1061 = vpack.c.bf16 %v1060, %v1060
  %v1063 = vsel %vm296, %v1061, 0
  %1065 = vmatprep.subr.bf16.mxu0 0
  %1066 = vmatpush1.bf16.msra.mxu0 %v288
  %1067 = vmatprep.subr.bf16.mxu0 0
  %1068 = vmatpush1.bf16.msra.mxu0 %v289
  %1069 = vmatprep.subr.bf16.mxu0 0
  %1070 = vmatpush1.bf16.msra.mxu0 %v290
  %1071 = vmatprep.subr.bf16.mxu0 0
  %1072 = vmatpush1.bf16.msra.mxu0 %v291
  %1073 = vmatprep.subr.bf16.mxu0 0
  %1074 = vmatpush1.bf16.msra.mxu0 0
  %1075 = vmatprep.subr.bf16.mxu0 0
  %1076 = vmatpush1.bf16.msra.mxu0 0
  %1077 = vmatprep.subr.bf16.mxu0 0
  %1078 = vmatpush1.bf16.msra.mxu0 0
  %1079 = vmatprep.subr.bf16.mxu0 0
  %1080 = vmatpush1.bf16.msra.mxu0 0
  %1081 = vmatprep.subr.bf16.mxu0 0
  %1082 = vmatpush1.bf16.msra.mxu0 0
  %1083 = vmatprep.subr.bf16.mxu0 0
  %1084 = vmatpush1.bf16.msra.mxu0 0
  %1085 = vmatprep.subr.bf16.mxu0 0
  %1086 = vmatpush1.bf16.msra.mxu0 0
  %1087 = vmatprep.subr.bf16.mxu0 0
  %1088 = vmatpush1.bf16.msra.mxu0 0
  %1089 = vmatprep.subr.bf16.mxu0 0
  %1090 = vmatpush1.bf16.msra.mxu0 0
  %1091 = vmatprep.subr.bf16.mxu0 0
  %1092 = vmatpush1.bf16.msra.mxu0 0
  %1093 = vmatprep.subr.bf16.mxu0 0
  %1094 = vmatpush1.bf16.msra.mxu0 0
  %1095 = vmatprep.subr.bf16.mxu0 0
  %1096 = vmatpush1.bf16.msra.mxu0 0
  %1097 = vmatprep.mubr.bf16.mxu0 0
  %1098 = vmatmul.mubr.bf16.gmra.mrb[0].mxu0 %v1063
  %v1099 = vpop.f32.mrb[0].mxu0
  %v1100 = vadd.f32 %v182, %v1099
  %v1101 = vpop.f32.mrb[0].mxu0
  %v1102 = vpop.f32.mrb[0].mxu0
  %v1103 = vpop.f32.mrb[0].mxu0
  %1104 = vdwg.mxu0
  %v1105 = vmul.f32 %v1100, %v20
  %v1106 = vxor.u32 %v1105, 2147483648
  %v1107 = vmul.f32 %v1106, 1.442695
  %v1108 = vpow.pop %v1107
  %v1109 = vadd.f32 %v1108, 1.0
  %v1110 = vrcp.pop %v1109
  %v1111 = vmul.f32 1.0, %v1110
  %v1112 = vmul.f32 %v1111, %v20
  %v1113 = vadd.f32 %v1112, %v21
  %v1114 = vmul.f32 %v1113, %v971
  %1116 = vrot.lane.b32.xlu0 %v1113, 64
  %v1117 = vpop.permute.xlu0 %1116
  %v1119 = vmul.f32 %v1113, %v1117
  %1121 = vrot.lane.b32.xlu0 %v1119, 32
  %v1122 = vpop.permute.xlu0 %1121
  %v1124 = vadd.f32 %v1114, %v1122
  %v1125 = vtanh.pop %v1124
  %1127 = vrot.lane.b32.xlu0 %v1125, 64
  %v1128 = vpop.permute.xlu0 %1127
  %v1130 = vmul.f32 %v1113, %v1128
  %v1131 = vpack.c.bf16 %v1051, %v1051
  %1133 = vrot.lane.b32.xlu0 %v1131, 32
  %v1134 = vpop.permute.xlu0 %1133
  %v1136 = vsel %vm195, %v1134, 0
  %1138 = vmatprep.subr.bf16.mxu0 0
  %1139 = vmatpush1.bf16.msra.mxu0 %v191
  %1140 = vmatprep.subr.bf16.mxu0 0
  %1141 = vmatpush1.bf16.msra.mxu0 %v192
  %1142 = vmatprep.subr.bf16.mxu0 0
  %1143 = vmatpush1.bf16.msra.mxu0 0
  %1144 = vmatprep.subr.bf16.mxu0 0
  %1145 = vmatpush1.bf16.msra.mxu0 0
  %1146 = vmatprep.subr.bf16.mxu0 0
  %1147 = vmatpush1.bf16.msra.mxu0 0
  %1148 = vmatprep.subr.bf16.mxu0 0
  %1149 = vmatpush1.bf16.msra.mxu0 0
  %1150 = vmatprep.subr.bf16.mxu0 0
  %1151 = vmatpush1.bf16.msra.mxu0 0
  %1152 = vmatprep.subr.bf16.mxu0 0
  %1153 = vmatpush1.bf16.msra.mxu0 0
  %1154 = vmatprep.subr.bf16.mxu0 0
  %1155 = vmatpush1.bf16.msra.mxu0 0
  %1156 = vmatprep.subr.bf16.mxu0 0
  %1157 = vmatpush1.bf16.msra.mxu0 0
  %1158 = vmatprep.subr.bf16.mxu0 0
  %1159 = vmatpush1.bf16.msra.mxu0 0
  %1160 = vmatprep.subr.bf16.mxu0 0
  %1161 = vmatpush1.bf16.msra.mxu0 0
  %1162 = vmatprep.subr.bf16.mxu0 0
  %1163 = vmatpush1.bf16.msra.mxu0 0
  %1164 = vmatprep.subr.bf16.mxu0 0
  %1165 = vmatpush1.bf16.msra.mxu0 0
  %1166 = vmatprep.subr.bf16.mxu0 0
  %1167 = vmatpush1.bf16.msra.mxu0 0
  %1168 = vmatprep.subr.bf16.mxu0 0
  %1169 = vmatpush1.bf16.msra.mxu0 0
  %1170 = vmatprep.mubr.bf16.mxu0 0
  %1171 = vmatmul.mubr.bf16.gmra.mrb[0].mxu0 %v1136
  %v1172 = vpop.f32.mrb[0].mxu0
  %v1173 = vadd.f32 0.0, %v1172
  %v1174 = vpop.f32.mrb[0].mxu0
  %v1175 = vpop.f32.mrb[0].mxu0
  %v1176 = vpop.f32.mrb[0].mxu0
  %1177 = vdwg.mxu0
  %v1178 = vadd.f32 %v159, %v1173
  %v1179 = vmul.f32 %v1178, %v20
  %v1180 = vxor.u32 %v1179, 2147483648
  %v1181 = vmul.f32 %v1180, 1.442695
  %v1182 = vpow.pop %v1181
  %v1183 = vadd.f32 %v1182, 1.0
  %v1184 = vrcp.pop %v1183
  %v1185 = vmul.f32 1.0, %v1184
  %v1186 = vmul.f32 %v1185, %v20
  %v1187 = vadd.f32 %v1186, %v21
  %v1188 = vmul.f32 %v1187, %v1045
  %1190 = vrot.lane.b32.xlu0 %v1187, 64
  %v1191 = vpop.permute.xlu0 %1190
  %v1193 = vmul.f32 %v1187, %v1191
  %1195 = vrot.lane.b32.xlu0 %v1193, 32
  %v1196 = vpop.permute.xlu0 %1195
  %v1198 = vadd.f32 %v1188, %v1196
  %v1199 = vtanh.pop %v1198
  %1201 = vrot.lane.b32.xlu0 %v1199, 64
  %v1202 = vpop.permute.xlu0 %1201
  %v1204 = vmul.f32 %v1187, %v1202
  %1206 = vrot.lane.b32.xlu0 %v1204, 32
  %v1207 = vpop.permute.xlu0 %1206
  %1210 = vrot.lane.b32.xlu0 %v1130, 64
  %v1211 = vpop.permute.xlu0 %1210
  %v1213 = vsel %vm195, %v1207, %v1211
  %v1214 = vpack.c.bf16 %v1213, %v1213
  %v1216 = vsel %vm296, %v1214, 0
  %1218 = vmatprep.subr.bf16.mxu0 0
  %1219 = vmatpush1.bf16.msra.mxu0 %v288
  %1220 = vmatprep.subr.bf16.mxu0 0
  %1221 = vmatpush1.bf16.msra.mxu0 %v289
  %1222 = vmatprep.subr.bf16.mxu0 0
  %1223 = vmatpush1.bf16.msra.mxu0 %v290
  %1224 = vmatprep.subr.bf16.mxu0 0
  %1225 = vmatpush1.bf16.msra.mxu0 %v291
  %1226 = vmatprep.subr.bf16.mxu0 0
  %1227 = vmatpush1.bf16.msra.mxu0 0
  %1228 = vmatprep.subr.bf16.mxu0 0
  %1229 = vmatpush1.bf16.msra.mxu0 0
  %1230 = vmatprep.subr.bf16.mxu0 0
  %1231 = vmatpush1.bf16.msra.mxu0 0
  %1232 = vmatprep.subr.bf16.mxu0 0
  %1233 = vmatpush1.bf16.msra.mxu0 0
  %1234 = vmatprep.subr.bf16.mxu0 0
  %1235 = vmatpush1.bf16.msra.mxu0 0
  %1236 = vmatprep.subr.bf16.mxu0 0
  %1237 = vmatpush1.bf16.msra.mxu0 0
  %1238 = vmatprep.subr.bf16.mxu0 0
  %1239 = vmatpush1.bf16.msra.mxu0 0
  %1240 = vmatprep.subr.bf16.mxu0 0
  %1241 = vmatpush1.bf16.msra.mxu0 0
  %1242 = vmatprep.subr.bf16.mxu0 0
  %1243 = vmatpush1.bf16.msra.mxu0 0
  %1244 = vmatprep.subr.bf16.mxu0 0
  %1245 = vmatpush1.bf16.msra.mxu0 0
  %1246 = vmatprep.subr.bf16.mxu0 0
  %1247 = vmatpush1.bf16.msra.mxu0 0
  %1248 = vmatprep.subr.bf16.mxu0 0
  %1249 = vmatpush1.bf16.msra.mxu0 0
  %1250 = vmatprep.mubr.bf16.mxu0 0
  %1251 = vmatmul.mubr.bf16.gmra.mrb[0].mxu0 %v1216
  %v1252 = vpop.f32.mrb[0].mxu0
  %v1253 = vadd.f32 %v182, %v1252
  %v1254 = vpop.f32.mrb[0].mxu0
  %v1255 = vpop.f32.mrb[0].mxu0
  %v1256 = vpop.f32.mrb[0].mxu0
  %1257 = vdwg.mxu0
  %v1258 = vmul.f32 %v1253, %v20
  %v1259 = vxor.u32 %v1258, 2147483648
  %v1260 = vmul.f32 %v1259, 1.442695
  %v1261 = vpow.pop %v1260
  %v1262 = vadd.f32 %v1261, 1.0
  %v1263 = vrcp.pop %v1262
  %v1264 = vmul.f32 1.0, %v1263
  %v1265 = vmul.f32 %v1264, %v20
  %v1266 = vadd.f32 %v1265, %v21
  %v1267 = vmul.f32 %v1266, %v1124
  %1269 = vrot.lane.b32.xlu0 %v1266, 64
  %v1270 = vpop.permute.xlu0 %1269
  %v1272 = vmul.f32 %v1266, %v1270
  %1274 = vrot.lane.b32.xlu0 %v1272, 32
  %v1275 = vpop.permute.xlu0 %1274
  %v1277 = vadd.f32 %v1267, %v1275
  %v1278 = vtanh.pop %v1277
  %1280 = vrot.lane.b32.xlu0 %v1278, 64
  %v1281 = vpop.permute.xlu0 %1280
  %v1283 = vmul.f32 %v1266, %v1281
  %v1284 = vpack.c.bf16 %v1204, %v1204
  %1286 = vrot.lane.b32.xlu0 %v1284, 32
  %v1287 = vpop.permute.xlu0 %1286
  %v1289 = vsel %vm195, %v1287, 0
  %1291 = vmatprep.subr.bf16.mxu0 0
  %1292 = vmatpush1.bf16.msra.mxu0 %v191
  %1293 = vmatprep.subr.bf16.mxu0 0
  %1294 = vmatpush1.bf16.msra.mxu0 %v192
  %1295 = vmatprep.subr.bf16.mxu0 0
  %1296 = vmatpush1.bf16.msra.mxu0 0
  %1297 = vmatprep.subr.bf16.mxu0 0
  %1298 = vmatpush1.bf16.msra.mxu0 0
  %1299 = vmatprep.subr.bf16.mxu0 0
  %1300 = vmatpush1.bf16.msra.mxu0 0
  %1301 = vmatprep.subr.bf16.mxu0 0
  %1302 = vmatpush1.bf16.msra.mxu0 0
  %1303 = vmatprep.subr.bf16.mxu0 0
  %1304 = vmatpush1.bf16.msra.mxu0 0
  %1305 = vmatprep.subr.bf16.mxu0 0
  %1306 = vmatpush1.bf16.msra.mxu0 0
  %1307 = vmatprep.subr.bf16.mxu0 0
  %1308 = vmatpush1.bf16.msra.mxu0 0
  %1309 = vmatprep.subr.bf16.mxu0 0
  %1310 = vmatpush1.bf16.msra.mxu0 0
  %1311 = vmatprep.subr.bf16.mxu0 0
  %1312 = vmatpush1.bf16.msra.mxu0 0
  %1313 = vmatprep.subr.bf16.mxu0 0
  %1314 = vmatpush1.bf16.msra.mxu0 0
  %1315 = vmatprep.subr.bf16.mxu0 0
  %1316 = vmatpush1.bf16.msra.mxu0 0
  %1317 = vmatprep.subr.bf16.mxu0 0
  %1318 = vmatpush1.bf16.msra.mxu0 0
  %1319 = vmatprep.subr.bf16.mxu0 0
  %1320 = vmatpush1.bf16.msra.mxu0 0
  %1321 = vmatprep.subr.bf16.mxu0 0
  %1322 = vmatpush1.bf16.msra.mxu0 0
  %1323 = vmatprep.mubr.bf16.mxu0 0
  %1324 = vmatmul.mubr.bf16.gmra.mrb[0].mxu0 %v1289
  %v1325 = vpop.f32.mrb[0].mxu0
  %v1326 = vadd.f32 0.0, %v1325
  %v1327 = vpop.f32.mrb[0].mxu0
  %v1328 = vpop.f32.mrb[0].mxu0
  %v1329 = vpop.f32.mrb[0].mxu0
  %1330 = vdwg.mxu0
  %v1331 = vadd.f32 %v164, %v1326
  %v1332 = vmul.f32 %v1331, %v20
  %v1333 = vxor.u32 %v1332, 2147483648
  %v1334 = vmul.f32 %v1333, 1.442695
  %v1335 = vpow.pop %v1334
  %v1336 = vadd.f32 %v1335, 1.0
  %v1337 = vrcp.pop %v1336
  %v1338 = vmul.f32 1.0, %v1337
  %v1339 = vmul.f32 %v1338, %v20
  %v1340 = vadd.f32 %v1339, %v21
  %v1341 = vmul.f32 %v1340, %v1198
  %1343 = vrot.lane.b32.xlu0 %v1340, 64
  %v1344 = vpop.permute.xlu0 %1343
  %v1346 = vmul.f32 %v1340, %v1344
  %1348 = vrot.lane.b32.xlu0 %v1346, 32
  %v1349 = vpop.permute.xlu0 %1348
  %v1351 = vadd.f32 %v1341, %v1349
  %v1352 = vtanh.pop %v1351
  %1354 = vrot.lane.b32.xlu0 %v1352, 64
  %v1355 = vpop.permute.xlu0 %1354
  %v1357 = vmul.f32 %v1340, %v1355
  %1359 = vrot.lane.b32.xlu0 %v1357, 32
  %v1360 = vpop.permute.xlu0 %1359
  %1363 = vrot.lane.b32.xlu0 %v1283, 64
  %v1364 = vpop.permute.xlu0 %1363
  %v1366 = vsel %vm195, %v1360, %v1364
  %v1367 = vpack.c.bf16 %v1366, %v1366
  %v1369 = vsel %vm296, %v1367, 0
  %1371 = vmatprep.subr.bf16.mxu0 0
  %1372 = vmatpush1.bf16.msra.mxu0 %v288
  %1373 = vmatprep.subr.bf16.mxu0 0
  %1374 = vmatpush1.bf16.msra.mxu0 %v289
  %1375 = vmatprep.subr.bf16.mxu0 0
  %1376 = vmatpush1.bf16.msra.mxu0 %v290
  %1377 = vmatprep.subr.bf16.mxu0 0
  %1378 = vmatpush1.bf16.msra.mxu0 %v291
  %1379 = vmatprep.subr.bf16.mxu0 0
  %1380 = vmatpush1.bf16.msra.mxu0 0
  %1381 = vmatprep.subr.bf16.mxu0 0
  %1382 = vmatpush1.bf16.msra.mxu0 0
  %1383 = vmatprep.subr.bf16.mxu0 0
  %1384 = vmatpush1.bf16.msra.mxu0 0
  %1385 = vmatprep.subr.bf16.mxu0 0
  %1386 = vmatpush1.bf16.msra.mxu0 0
  %1387 = vmatprep.subr.bf16.mxu0 0
  %1388 = vmatpush1.bf16.msra.mxu0 0
  %1389 = vmatprep.subr.bf16.mxu0 0
  %1390 = vmatpush1.bf16.msra.mxu0 0
  %1391 = vmatprep.subr.bf16.mxu0 0
  %1392 = vmatpush1.bf16.msra.mxu0 0
  %1393 = vmatprep.subr.bf16.mxu0 0
  %1394 = vmatpush1.bf16.msra.mxu0 0
  %1395 = vmatprep.subr.bf16.mxu0 0
  %1396 = vmatpush1.bf16.msra.mxu0 0
  %1397 = vmatprep.subr.bf16.mxu0 0
  %1398 = vmatpush1.bf16.msra.mxu0 0
  %1399 = vmatprep.subr.bf16.mxu0 0
  %1400 = vmatpush1.bf16.msra.mxu0 0
  %1401 = vmatprep.subr.bf16.mxu0 0
  %1402 = vmatpush1.bf16.msra.mxu0 0
  %1403 = vmatprep.mubr.bf16.mxu0 0
  %1404 = vmatmul.mubr.bf16.gmra.mrb[0].mxu0 %v1369
  %v1405 = vpop.f32.mrb[0].mxu0
  %v1406 = vadd.f32 %v182, %v1405
  %v1407 = vpop.f32.mrb[0].mxu0
  %v1408 = vpop.f32.mrb[0].mxu0
  %v1409 = vpop.f32.mrb[0].mxu0
  %1410 = vdwg.mxu0
  %v1411 = vmul.f32 %v1406, %v20
  %v1412 = vxor.u32 %v1411, 2147483648
  %v1413 = vmul.f32 %v1412, 1.442695
  %v1414 = vpow.pop %v1413
  %v1415 = vadd.f32 %v1414, 1.0
  %v1416 = vrcp.pop %v1415
  %v1417 = vmul.f32 1.0, %v1416
  %v1418 = vmul.f32 %v1417, %v20
  %v1419 = vadd.f32 %v1418, %v21
  %v1420 = vmul.f32 %v1419, %v1277
  %1422 = vrot.lane.b32.xlu0 %v1419, 64
  %v1423 = vpop.permute.xlu0 %1422
  %v1425 = vmul.f32 %v1419, %v1423
  %1427 = vrot.lane.b32.xlu0 %v1425, 32
  %v1428 = vpop.permute.xlu0 %1427
  %v1430 = vadd.f32 %v1420, %v1428
  %v1431 = vtanh.pop %v1430
  %1433 = vrot.lane.b32.xlu0 %v1431, 64
  %v1434 = vpop.permute.xlu0 %1433
  %v1436 = vmul.f32 %v1419, %v1434
  %v1437 = vld [vmem:[%s1 + $0x12] sm:$0xff]
  %v1438 = vld [vmem:[%s1 + $0x1a] sm:$0xff]
  %v1439 = vld [vmem:[%s1 + $0x22] sm:$0xff]
  %v1440 = vld [vmem:[%s1 + $0x2a] sm:$0xff]
  %v1441 = vld [vmem:[%s1 + $0x72] sm:$0x1]
  %v1442 = vlaneseq
  %v1443 = vshrl.u32 %v1442, 7
  %v1444 = vsub.s32 0, %v1443
  %v1445 = vrot.slane %v1441, %v1444
  %1447 = vrot.lane.b32.xlu0 %v1436, 32
  %v1448 = vpop.permute.xlu0 %1447
  %v1449 = vsel %vm195, %v1448, 0
  %1451 = vmatprep.subr.mxu0 0.0
  %1452 = vmatpush1.msra.mxu0 %v1437
  %1453 = vmatprep.subr.mxu0 0.0
  %1454 = vmatpush1.msra.mxu0 %v1438
  %1455 = vmatprep.subr.mxu0 0.0
  %1456 = vmatpush1.msra.mxu0 %v1439
  %1457 = vmatprep.subr.mxu0 0.0
  %1458 = vmatpush1.msra.mxu0 %v1440
  %1459 = vmatprep.subr.mxu0 0.0
  %1460 = vmatpush1.msra.mxu0 0.0
  %1461 = vmatprep.subr.mxu0 0.0
  %1462 = vmatpush1.msra.mxu0 0.0
  %1463 = vmatprep.subr.mxu0 0.0
  %1464 = vmatpush1.msra.mxu0 0.0
  %1465 = vmatprep.subr.mxu0 0.0
  %1466 = vmatpush1.msra.mxu0 0.0
  %1467 = vmatprep.subr.mxu0 0.0
  %1468 = vmatpush1.msra.mxu0 0.0
  %1469 = vmatprep.subr.mxu0 0.0
  %1470 = vmatpush1.msra.mxu0 0.0
  %1471 = vmatprep.subr.mxu0 0.0
  %1472 = vmatpush1.msra.mxu0 0.0
  %1473 = vmatprep.subr.mxu0 0.0
  %1474 = vmatpush1.msra.mxu0 0.0
  %1475 = vmatprep.subr.mxu0 0.0
  %1476 = vmatpush1.msra.mxu0 0.0
  %1477 = vmatprep.subr.mxu0 0.0
  %1478 = vmatpush1.msra.mxu0 0.0
  %1479 = vmatprep.subr.mxu0 0.0
  %1480 = vmatpush1.msra.mxu0 0.0
  %1481 = vmatprep.subr.mxu0 0.0
  %1482 = vmatpush1.msra.mxu0 0.0
  %1483 = vmatprep.subr.mxu0 0.0
  %1484 = vmatpush1.msra.mxu0 0.0
  %1485 = vmatprep.subr.mxu0 0.0
  %1486 = vmatpush1.msra.mxu0 0.0
  %1487 = vmatprep.subr.mxu0 0.0
  %1488 = vmatpush1.msra.mxu0 0.0
  %1489 = vmatprep.subr.mxu0 0.0
  %1490 = vmatpush1.msra.mxu0 0.0
  %1491 = vmatprep.subr.mxu0 0.0
  %1492 = vmatpush1.msra.mxu0 0.0
  %1493 = vmatprep.subr.mxu0 0.0
  %1494 = vmatpush1.msra.mxu0 0.0
  %1495 = vmatprep.subr.mxu0 0.0
  %1496 = vmatpush1.msra.mxu0 0.0
  %1497 = vmatprep.subr.mxu0 0.0
  %1498 = vmatpush1.msra.mxu0 0.0
  %1499 = vmatprep.subr.mxu0 0.0
  %1500 = vmatpush1.msra.mxu0 0.0
  %1501 = vmatprep.subr.mxu0 0.0
  %1502 = vmatpush1.msra.mxu0 0.0
  %1503 = vmatprep.subr.mxu0 0.0
  %1504 = vmatpush1.msra.mxu0 0.0
  %1505 = vmatprep.subr.mxu0 0.0
  %1506 = vmatpush1.msra.mxu0 0.0
  %1507 = vmatprep.subr.mxu0 0.0
  %1508 = vmatpush1.msra.mxu0 0.0
  %1509 = vmatprep.subr.mxu0 0.0
  %1510 = vmatpush1.msra.mxu0 0.0
  %1511 = vmatprep.subr.mxu0 0.0
  %1512 = vmatpush1.msra.mxu0 0.0
  %1513 = vmatprep.subr.mxu0 0.0
  %1514 = vmatpush1.msra.mxu0 0.0
  %1515 = vmatprep.mubr.f32.mxu0 0.0
  %1516 = vmatmul.mubr.f32.gmra.mrb[0].mxu0 %v1449
  %v1517 = vpop.f32.mrb[0].mxu0
  %v1518 = vadd.f32 %v1445, %v1517
  %v1519 = vpop.f32.mrb[0].mxu0
  %1520 = vdwg.mxu0
  %v1521 = vmax.f32 %v1518, 0.0
  %v1522 = vld [vmem:[%s1 + $0x32] sm:$0xff]
  %v1523 = vld [vmem:[%s1 + $0x3a] sm:$0xff]
  %v1524 = vld [vmem:[%s1 + $0x42] sm:$0xff]
  %v1525 = vld [vmem:[%s1 + $0x4a] sm:$0xff]
  %v1526 = vld [vmem:[%s1 + $0x73] sm:$0x1]
  %v1527 = vlaneseq
  %v1528 = vshrl.u32 %v1527, 7
  %v1529 = vsub.s32 0, %v1528
  %v1530 = vrot.slane %v1526, %v1529
  %v1532 = vsel %vm195, %v1521, 0
  %1534 = vmatprep.subr.mxu0 0.0
  %1535 = vmatpush1.msra.mxu0 %v1522
  %1536 = vmatprep.subr.mxu0 0.0
  %1537 = vmatpush1.msra.mxu0 %v1523
  %1538 = vmatprep.subr.mxu0 0.0
  %1539 = vmatpush1.msra.mxu0 %v1524
  %1540 = vmatprep.subr.mxu0 0.0
  %1541 = vmatpush1.msra.mxu0 %v1525
  %1542 = vmatprep.subr.mxu0 0.0
  %1543 = vmatpush1.msra.mxu0 0.0
  %1544 = vmatprep.subr.mxu0 0.0
  %1545 = vmatpush1.msra.mxu0 0.0
  %1546 = vmatprep.subr.mxu0 0.0
  %1547 = vmatpush1.msra.mxu0 0.0
  %1548 = vmatprep.subr.mxu0 0.0
  %1549 = vmatpush1.msra.mxu0 0.0
  %1550 = vmatprep.subr.mxu0 0.0
  %1551 = vmatpush1.msra.mxu0 0.0
  %1552 = vmatprep.subr.mxu0 0.0
  %1553 = vmatpush1.msra.mxu0 0.0
  %1554 = vmatprep.subr.mxu0 0.0
  %1555 = vmatpush1.msra.mxu0 0.0
  %1556 = vmatprep.subr.mxu0 0.0
  %1557 = vmatpush1.msra.mxu0 0.0
  %1558 = vmatprep.subr.mxu0 0.0
  %1559 = vmatpush1.msra.mxu0 0.0
  %1560 = vmatprep.subr.mxu0 0.0
  %1561 = vmatpush1.msra.mxu0 0.0
  %1562 = vmatprep.subr.mxu0 0.0
  %1563 = vmatpush1.msra.mxu0 0.0
  %1564 = vmatprep.subr.mxu0 0.0
  %1565 = vmatpush1.msra.mxu0 0.0
  %1566 = vmatprep.subr.mxu0 0.0
  %1567 = vmatpush1.msra.mxu0 0.0
  %1568 = vmatprep.subr.mxu0 0.0
  %1569 = vmatpush1.msra.mxu0 0.0
  %1570 = vmatprep.subr.mxu0 0.0
  %1571 = vmatpush1.msra.mxu0 0.0
  %1572 = vmatprep.subr.mxu0 0.0
  %1573 = vmatpush1.msra.mxu0 0.0
  %1574 = vmatprep.subr.mxu0 0.0
  %1575 = vmatpush1.msra.mxu0 0.0
  %1576 = vmatprep.subr.mxu0 0.0
  %1577 = vmatpush1.msra.mxu0 0.0
  %1578 = vmatprep.subr.mxu0 0.0
  %1579 = vmatpush1.msra.mxu0 0.0
  %1580 = vmatprep.subr.mxu0 0.0
  %1581 = vmatpush1.msra.mxu0 0.0
  %1582 = vmatprep.subr.mxu0 0.0
  %1583 = vmatpush1.msra.mxu0 0.0
  %1584 = vmatprep.subr.mxu0 0.0
  %1585 = vmatpush1.msra.mxu0 0.0
  %1586 = vmatprep.subr.mxu0 0.0
  %1587 = vmatpush1.msra.mxu0 0.0
  %1588 = vmatprep.subr.mxu0 0.0
  %1589 = vmatpush1.msra.mxu0 0.0
  %1590 = vmatprep.subr.mxu0 0.0
  %1591 = vmatpush1.msra.mxu0 0.0
  %1592 = vmatprep.subr.mxu0 0.0
  %1593 = vmatpush1.msra.mxu0 0.0
  %1594 = vmatprep.subr.mxu0 0.0
  %1595 = vmatpush1.msra.mxu0 0.0
  %1596 = vmatprep.subr.mxu0 0.0
  %1597 = vmatpush1.msra.mxu0 0.0
  %1598 = vmatprep.mubr.f32.mxu0 0.0
  %1599 = vmatmul.mubr.f32.gmra.mrb[0].mxu0 %v1532
  %v1600 = vpop.f32.mrb[0].mxu0
  %v1601 = vadd.f32 %v1530, %v1600
  %v1602 = vpop.f32.mrb[0].mxu0
  %1603 = vdwg.mxu0
  %v1604 = vmax.f32 %v1601, 0.0
  %v1605 = vld [vmem:[%s1 + $0x52] sm:$0xff]
  %v1606 = vld [vmem:[%s1 + $0x5a] sm:$0xff]
  %v1607 = vld [vmem:[%s1 + $0x62] sm:$0xff]
  %v1608 = vld [vmem:[%s1 + $0x6a] sm:$0xff]
  %v1609 = vld [vmem:[%s1 + $0x74] sm:$0x1]
  %v1610 = vlaneseq
  %v1611 = vshrl.u32 %v1610, 7
  %v1612 = vsub.s32 0, %v1611
  %v1613 = vrot.slane %v1609, %v1612
  %v1615 = vsel %vm195, %v1604, 0
  %1617 = vmatprep.subr.mxu0 0.0
  %1618 = vmatpush1.msra.mxu0 %v1605
  %1619 = vmatprep.subr.mxu0 0.0
  %1620 = vmatpush1.msra.mxu0 %v1606
  %1621 = vmatprep.subr.mxu0 0.0
  %1622 = vmatpush1.msra.mxu0 %v1607
  %1623 = vmatprep.subr.mxu0 0.0
  %1624 = vmatpush1.msra.mxu0 %v1608
  %1625 = vmatprep.subr.mxu0 0.0
  %1626 = vmatpush1.msra.mxu0 0.0
  %1627 = vmatprep.subr.mxu0 0.0
  %1628 = vmatpush1.msra.mxu0 0.0
  %1629 = vmatprep.subr.mxu0 0.0
  %1630 = vmatpush1.msra.mxu0 0.0
  %1631 = vmatprep.subr.mxu0 0.0
  %1632 = vmatpush1.msra.mxu0 0.0
  %1633 = vmatprep.subr.mxu0 0.0
  %1634 = vmatpush1.msra.mxu0 0.0
  %1635 = vmatprep.subr.mxu0 0.0
  %1636 = vmatpush1.msra.mxu0 0.0
  %1637 = vmatprep.subr.mxu0 0.0
  %1638 = vmatpush1.msra.mxu0 0.0
  %1639 = vmatprep.subr.mxu0 0.0
  %1640 = vmatpush1.msra.mxu0 0.0
  %1641 = vmatprep.subr.mxu0 0.0
  %1642 = vmatpush1.msra.mxu0 0.0
  %1643 = vmatprep.subr.mxu0 0.0
  %1644 = vmatpush1.msra.mxu0 0.0
  %1645 = vmatprep.subr.mxu0 0.0
  %1646 = vmatpush1.msra.mxu0 0.0
  %1647 = vmatprep.subr.mxu0 0.0
  %1648 = vmatpush1.msra.mxu0 0.0
  %1649 = vmatprep.subr.mxu0 0.0
  %1650 = vmatpush1.msra.mxu0 0.0
  %1651 = vmatprep.subr.mxu0 0.0
  %1652 = vmatpush1.msra.mxu0 0.0
  %1653 = vmatprep.subr.mxu0 0.0
  %1654 = vmatpush1.msra.mxu0 0.0
  %1655 = vmatprep.subr.mxu0 0.0
  %1656 = vmatpush1.msra.mxu0 0.0
  %1657 = vmatprep.subr.mxu0 0.0
  %1658 = vmatpush1.msra.mxu0 0.0
  %1659 = vmatprep.subr.mxu0 0.0
  %1660 = vmatpush1.msra.mxu0 0.0
  %1661 = vmatprep.subr.mxu0 0.0
  %1662 = vmatpush1.msra.mxu0 0.0
  %1663 = vmatprep.subr.mxu0 0.0
  %1664 = vmatpush1.msra.mxu0 0.0
  %1665 = vmatprep.subr.mxu0 0.0
  %1666 = vmatpush1.msra.mxu0 0.0
  %1667 = vmatprep.subr.mxu0 0.0
  %1668 = vmatpush1.msra.mxu0 0.0
  %1669 = vmatprep.subr.mxu0 0.0
  %1670 = vmatpush1.msra.mxu0 0.0
  %1671 = vmatprep.subr.mxu0 0.0
  %1672 = vmatpush1.msra.mxu0 0.0
  %1673 = vmatprep.subr.mxu0 0.0
  %1674 = vmatpush1.msra.mxu0 0.0
  %1675 = vmatprep.subr.mxu0 0.0
  %1676 = vmatpush1.msra.mxu0 0.0
  %1677 = vmatprep.subr.mxu0 0.0
  %1678 = vmatpush1.msra.mxu0 0.0
  %1679 = vmatprep.subr.mxu0 0.0
  %1680 = vmatpush1.msra.mxu0 0.0
  %1681 = vmatprep.mubr.f32.mxu0 0.0
  %1682 = vmatmul.mubr.f32.gmra.mrb[0].mxu0 %v1615
  %v1683 = vpop.f32.mrb[0].mxu0
  %v1684 = vadd.f32 %v1613, %v1683
  %v1685 = vpop.f32.mrb[0].mxu0
  %1686 = vdwg.mxu0
  %1687 = vst [vmem:[%s3] sm:$0xff] %v1684
  // Predicated region
  $region14: #{ud_lstm_ia_gp_forward.1} parent=0 // pred_check
    _
  $region15: #{ud_lstm_ia_gp_forward.1} parent=0 // pred_check_branch
    %1689 = sbr.rel (0) target = $region17
  $region16: #{ud_lstm_ia_gp_forward.1} parent=0 // pred_region
    _
  $region17: #{ud_lstm_ia_gp_forward.1} parent=0 // pred_fallthru
    _
  // Predicated region
  $region18: #{ud_lstm_ia_gp_forward.1} parent=0 // pred_check
    _
  $region19: #{ud_lstm_ia_gp_forward.1} parent=0 // pred_check_branch
    %1691 = sbr.rel (0) target = $region21
  $region20: #{ud_lstm_ia_gp_forward.1} parent=0 // pred_region
    _
  $region21: #{ud_lstm_ia_gp_forward.1} parent=0 // pred_fallthru
    _

</llo_original>
